<compile_context>
chip_gen: v5e
topology: v5e:2x2
jax: 0.10.0
libtpu: 0.0.40
codegen_flags: <defaults>
</compile_context>

<pallas_src>
import functools

import jax
import jax.numpy as jnp
from jax.experimental import pallas as pl
from jax.experimental.pallas import tpu as pltpu


_TAPS = tuple((oy, ox) for oy in (-1, 0, 1) for ox in (-1, 0, 1))


# ----------------------------------------------------------------------------
# In-kernel helpers
# ----------------------------------------------------------------------------
def _make_tap_masks(H, W):
    """Per-tap validity masks, shape (1, H*W) bool (None for the center tap).

    Computed ONCE per kernel invocation and shared by both convolutions (JAX
    does not CSE the duplicated iota/compare work across calls).
    """
    HW = H * W
    hw = jax.lax.broadcasted_iota(jnp.int32, (1, HW), 1)
    if W & (W - 1) == 0:
        xi = jnp.bitwise_and(hw, W - 1)          # column index, W power of two
    else:
        xi = jax.lax.rem(hw, W)                  # generic width (not hit in test)
    row = {-1: hw >= W, 0: None, 1: hw < (H - 1) * W}
    col = {-1: xi >= 1, 0: None, 1: xi <= W - 2}
    masks = []
    for oy, ox in _TAPS:
        r, c = row[oy], col[ox]
        masks.append(r if c is None else (c if r is None else jnp.logical_and(r, c)))
    return masks


def _instance_norm_relu(y, eps, inv_hw):
    """y: (C, H*W) f32. Per-channel InstanceNorm (biased var, affine=False) + ReLU.

    Single-sweep stats: sum(y), sum(y*y) then var = E[y^2] - mean^2 (clamped).
    Numerically weaker than the centered form, fine for post-conv activations
    at these scales.
    """
    s1 = jnp.sum(y, axis=1, keepdims=True)
    s2 = jnp.sum(y * y, axis=1, keepdims=True)
    mean = s1 * inv_hw
    var = jnp.maximum(s2 * inv_hw - mean * mean, 0.0)
    return jnp.maximum((y - mean) * jax.lax.rsqrt(var + eps), 0.0)


def _conv3x3(x, w_ref, masks, H, W, *, fused):
    """3x3 'SAME' conv of x: (Cin, H*W).

    fused=True : w_ref is (Cout, 9*Cin). Build the im2col matrix (tap-major,
                 then channel) and do ONE K=9*Cin MXU matmul.  Used when Cin is
                 a multiple of 8 so every tap block is sublane-tile aligned.
    fused=False: w_ref is (9, Cout, Cin). Per-tap accumulation — 9 small dots
                 into an f32 accumulator; no ragged im2col concat, no sublane
                 packing shuffles.
    Shifts are XLU lane rotations (pltpu.roll); masks provide the zero padding.
    """
    HW = H * W

    def tap(t):
        oy, ox = _TAPS[t]
        s = oy * W + ox                          # want shifted[i] = x[:, i + s]
        v = x if s == 0 else pltpu.roll(x, shift=(-s) % HW, axis=1)
        m = masks[t]
        return v if m is None else jnp.where(m, v, 0.0)

    if fused:
        patch = jnp.concatenate([tap(t) for t in range(9)], axis=0)   # (9*Cin, HW)
        return jnp.dot(w_ref[...].astype(jnp.float32), patch,
                       preferred_element_type=jnp.float32)

    w = w_ref[...].astype(jnp.float32)                                # (9, Cout, Cin)
    acc = jnp.dot(w[0], tap(0), preferred_element_type=jnp.float32)
    for t in range(1, 9):
        acc = acc + jnp.dot(w[t], tap(t), preferred_element_type=jnp.float32)
    return acc


# ----------------------------------------------------------------------------
# Fused kernel: upsample(+pad) -> concat -> conv3x3 -> IN -> ReLU -> conv3x3
#               -> IN -> ReLU.  One grid step per sample (InstanceNorm stats
#               are per sample, per channel); everything stays in VMEM/vregs.
# ----------------------------------------------------------------------------
def _up_doubleconv_kernel(*refs, H, W, eps, has_skip, fuse_up, fused1, fused2):
    # refs = ([x2_ref], x1_ref, [u_ref], w1_ref, w2_ref, o_ref)
    o_ref, w2_ref, w1_ref = refs[-1], refs[-2], refs[-3]
    pos = 0
    x2_ref = None
    if has_skip:
        x2_ref = refs[pos]
        pos += 1
    x1_ref = refs[pos]
    pos += 1
    u_ref = refs[pos] if fuse_up else None

    inv_hw = 1.0 / (H * W)

    x1 = x1_ref[0].astype(jnp.float32)
    if fuse_up:
        # Bilinear x2 upsample (align_corners=True) + zero pad as ONE MXU matmul
        # against the static interpolation operator (Hin*Win, H*W).
        x1 = jnp.dot(x1, u_ref[...].astype(jnp.float32),
                     preferred_element_type=jnp.float32)              # (C1, HW)

    # torch.cat([x2, x1], dim=1) done in-register (skip channels first).
    x = jnp.concatenate([x2_ref[0].astype(jnp.float32), x1], axis=0) if has_skip else x1

    masks = _make_tap_masks(H, W)    # shared by both convs

    # Conv bias omitted: exactly cancelled by the affine=False InstanceNorm.
    h = _instance_norm_relu(_conv3x3(x, w1_ref, masks, H, W, fused=fused1), eps, inv_hw)
    y = _instance_norm_relu(_conv3x3(h, w2_ref, masks, H, W, fused=fused2), eps, inv_hw)

    o_ref[0] = y.astype(o_ref.dtype)


# ----------------------------------------------------------------------------
# Host-side prep (one-time) + wrapper
# ----------------------------------------------------------------------------
def _interp_matrix_1d(n_in, n_out, pad_before=0, pad_after=0):
    """(n_in, pad_before+n_out+pad_after) 1-D linear interp operator,
    align_corners=True, composed with zero padding (padded columns are zero)."""
    if n_in == 1 or n_out == 1:
        src = jnp.zeros((n_out,), jnp.float32)
    else:
        src = jnp.arange(n_out, dtype=jnp.float32) * (n_in - 1) / (n_out - 1)
    i0 = jnp.clip(jnp.floor(src).astype(jnp.int32), 0, n_in - 1)
    i1 = jnp.minimum(i0 + 1, n_in - 1)
    frac = src - i0.astype(jnp.float32)
    rows = jnp.arange(n_in, dtype=jnp.int32)[:, None]
    core = ((rows == i0[None, :]).astype(jnp.float32) * (1.0 - frac)[None, :]
            + (rows == i1[None, :]).astype(jnp.float32) * frac[None, :])
    return jnp.pad(core, ((0, 0), (pad_before, pad_after)))


def prepare_up_weights(params):
    """One-time host-side weight flattening (hoisted out of the per-call path).

    w1: (3,3,Cin,Cmid) HWIO; w2: (3,3,Cmid,Cout) HWIO.
    Cin/Cmid multiple of 8 -> fused im2col form (Cout, 9*Cin);
    otherwise per-tap form (9, Cout, Cin).
    """
    w1 = jnp.asarray(params["w1"], jnp.float32)
    w2 = jnp.asarray(params["w2"], jnp.float32)
    cin, cmid = w1.shape[2], w1.shape[3]
    cout = w2.shape[3]
    assert w1.shape[:2] == (3, 3) and w2.shape[:3] == (3, 3, cmid)
    fused1 = cin % 8 == 0
    fused2 = cmid % 8 == 0
    w1p = (w1.reshape(9 * cin, cmid).T if fused1
           else w1.reshape(9, cin, cmid).transpose(0, 2, 1))
    w2p = (w2.reshape(9 * cmid, cout).T if fused2
           else w2.reshape(9, cmid, cout).transpose(0, 2, 1))
    return dict(w1=w1p, w2=w2p, fused1=fused1, fused2=fused2,
                cin=cin, cmid=cmid, cout=cout)


def up_forward(x1, prep, x2=None, *, eps=1e-5, max_fused_interp_elems=1 << 21):
    """`Up.forward` in NCHW. x1: (N, C1, H, W); x2: (N, C2, >=2H, >=2W) or None."""
    N, C1, Hi, Wi = x1.shape
    Ho, Wo = 2 * Hi, 2 * Wi
    if x2 is not None:
        assert x2.shape[0] == N
        C2, Ht, Wt = x2.shape[1], x2.shape[2], x2.shape[3]
        dy, dx = Ht - Ho, Wt - Wo
        assert dy >= 0 and dx >= 0, "skip connection smaller than upsampled input"
    else:
        C2, Ht, Wt, dy, dx = 0, Ho, Wo, 0, 0
    assert C1 + C2 == prep["cin"], (C1, C2, prep["cin"])
    HWt = Ht * Wt
    cout = prep["cout"]

    My = _interp_matrix_1d(Hi, Ho, dy // 2, dy - dy // 2)   # (Hi, Ht)
    Mx = _interp_matrix_1d(Wi, Wo, dx // 2, dx - dx // 2)   # (Wi, Wt)

    fuse_up = Hi * Wi * HWt <= max_fused_interp_elems
    if fuse_up:
        # Upsample+pad folded into the kernel via one resident Kronecker operator.
        interp = jnp.kron(My, Mx)                           # (Hi*Wi, Ht*Wt)
        x1_arg = x1.reshape(N, C1, Hi * Wi)
    else:
        # Large images: separable MATMUL upsample (no gathers) outside the kernel.
        # TODO(synk): fold the separable (row/col) interp matmuls into the kernel
        # for large HW instead of the Kronecker operator.
        interp = None
        x1_arg = jnp.einsum("nchw,hy,wx->ncyx", x1, My, Mx).reshape(N, C1, HWt)

    kernel = functools.partial(
        _up_doubleconv_kernel, H=Ht, W=Wt, eps=eps,
        has_skip=x2 is not None, fuse_up=fuse_up,
        fused1=prep["fused1"], fused2=prep["fused2"])

    def _act_map(n):
        return (n, 0, 0)

    def _const_map(ndim):
        return lambda n: (0,) * ndim

    in_specs, args = [], []
    if x2 is not None:
        in_specs.append(pl.BlockSpec((1, C2, HWt), _act_map))
        args.append(x2.reshape(N, C2, HWt))
    in_specs.append(pl.BlockSpec((1, C1, x1_arg.shape[2]), _act_map))
    args.append(x1_arg)
    if fuse_up:
        in_specs.append(pl.BlockSpec(interp.shape, _const_map(interp.ndim)))
        args.append(interp)
    # Constant-index weight/interp blocks stay resident across grid steps; the
    # extra double-buffer copy is negligible at these sizes (so no Buffered(1)).
    in_specs.append(pl.BlockSpec(prep["w1"].shape, _const_map(prep["w1"].ndim)))
    args.append(prep["w1"])
    in_specs.append(pl.BlockSpec(prep["w2"].shape, _const_map(prep["w2"].ndim)))
    args.append(prep["w2"])

    out = pl.pallas_call(
        kernel,
        out_shape=jax.ShapeDtypeStruct((N, cout, HWt), jnp.float32),
        grid_spec=pltpu.PrefetchScalarGridSpec(
            num_scalar_prefetch=0,
            grid=(N,),
            in_specs=in_specs,
            out_specs=pl.BlockSpec((1, cout, HWt), _act_map),
        ),
        compiler_params=pltpu.CompilerParams(
            # N samples -> both TensorCores on v7x.  For N==1 / odd N, add a
            # second parallel axis (e.g. spatial tile split) to balance TCs.
            dimension_semantics=("parallel",)),
    )(*args)
    return out.reshape(N, cout, Ht, Wt)


# ----------------------------------------------------------------------------
# Pure-JAX reference (gather-based upsample, conv with bias) for a sanity check.
# ----------------------------------------------------------------------------
def _ref_upsample_x2_align_corners(x):
    N, C, H, W = x.shape
    Ho, Wo = 2 * H, 2 * W

    def coords(n_in, n_out):
        if n_in == 1:
            return jnp.zeros((n_out,), jnp.float32)
        return jnp.arange(n_out, dtype=jnp.float32) * (n_in - 1) / (n_out - 1)

    ys, xs = coords(H, Ho), coords(W, Wo)
    y0 = jnp.floor(ys).astype(jnp.int32)
    x0 = jnp.floor(xs).astype(jnp.int32)
    y1 = jnp.minimum(y0 + 1, H - 1)
    x1i = jnp.minimum(x0 + 1, W - 1)
    wy = (ys - y0.astype(jnp.float32))[None, None, :, None]
    wx = (xs - x0.astype(jnp.float32))[None, None, None, :]
    g = lambda yi, xi: x[:, :, yi, :][:, :, :, xi]
    top = g(y0, x0) * (1 - wx) + g(y0, x1i) * wx
    bot = g(y1, x0) * (1 - wx) + g(y1, x1i) * wx
    return top * (1 - wy) + bot * wy


def _ref_conv_in_relu(x, w_hwio, b, eps=1e-5):
    y = jax.lax.conv_general_dilated(
        x, w_hwio, window_strides=(1, 1), padding="SAME",
        dimension_numbers=("NCHW", "HWIO", "NCHW"))
    y = y + b[None, :, None, None]
    mean = jnp.mean(y, axis=(2, 3), keepdims=True)
    var = jnp.mean((y - mean) ** 2, axis=(2, 3), keepdims=True)
    return jnp.maximum((y - mean) * jax.lax.rsqrt(var + eps), 0.0)


def _ref_up_forward(x1, params, x2=None):
    x1 = _ref_upsample_x2_align_corners(x1)
    if x2 is not None:
        dY = x2.shape[2] - x1.shape[2]
        dX = x2.shape[3] - x1.shape[3]
        if dY or dX:
            x1 = jnp.pad(x1, ((0, 0), (0, 0),
                              (dY // 2, dY - dY // 2),
                              (dX // 2, dX - dX // 2)))
        x1 = jnp.concatenate([x2, x1], axis=1)
    x = _ref_conv_in_relu(x1, params["w1"], params["b1"])
    return _ref_conv_in_relu(x, params["w2"], params["b2"])


# ----------------------------------------------------------------------------
if __name__ == "__main__":
    # Up(in_channels=8, out_channels=4, bilinear=True)
    in_channels, out_channels = 8, 4
    N, H1, W1 = 2, 8, 8
    C1 = in_channels // 2          # upsampled-branch channels
    C2 = in_channels - C1          # skip-connection channels

    key = jax.random.PRNGKey(0)
    k1, k2, k3, k4, k5, k6 = jax.random.split(key, 6)

    # NCHW, matching the PyTorch module: x1 [2,4,8,8], skip x2 [2,4,16,16].
    x1 = jax.random.normal(k1, (N, C1, H1, W1), jnp.float32)
    x2 = jax.random.normal(k2, (N, C2, 2 * H1, 2 * W1), jnp.float32)

    # Conv weights in HWIO == PyTorch (Cout,Cin,kh,kw).transpose(2,3,1,0).
    params = {
        "w1": 0.1 * jax.random.normal(k3, (3, 3, in_channels, out_channels), jnp.float32),
        "b1": 0.05 * jax.random.normal(k4, (out_channels,), jnp.float32),
        "w2": 0.1 * jax.random.normal(k5, (3, 3, out_channels, out_channels), jnp.float32),
        "b2": 0.05 * jax.random.normal(k6, (out_channels,), jnp.float32),
    }

    prep = prepare_up_weights(params)   # one-time host-side weight prep (hoisted)

    out = jax.block_until_ready(up_forward(x1, prep, x2))
    ref = jax.block_until_ready(_ref_up_forward(x1, params, x2))

    assert out.shape == (N, out_channels, 2 * H1, 2 * W1), out.shape
    assert jnp.allclose(out, ref, atol=1e-4, rtol=1e-4), \
        float(jnp.max(jnp.abs(out - ref)))
    print("KERNEL_OK")
</pallas_src>

<mosaic_0001>
module attributes {stable_mosaic.version = 11 : i64} {
  func.func @_up_doubleconv_kernel(%arg0: i32, %arg1: memref<1x4x256xf32, #tpu.memory_space<vmem>>, %arg2: memref<1x4x64xf32, #tpu.memory_space<vmem>>, %arg3: memref<64x256xf32, #tpu.memory_space<vmem>>, %arg4: memref<4x72xf32, #tpu.memory_space<vmem>>, %arg5: memref<9x4x4xf32, #tpu.memory_space<vmem>>, %arg6: memref<1x4x256xf32, #tpu.memory_space<vmem>>) attributes {dimension_semantics = [#tpu.dimension_semantics<parallel>], iteration_bounds = array<i64: 2>, scalar_prefetch = 0 : i64, scratch_operands = 0 : i64, tpu.core_type = #tpu.core_type<tc>, window_params = [{transform_indices = @transform_0, window_bounds = array<i64: 1, 4, 256>}, {transform_indices = @transform_1, window_bounds = array<i64: 1, 4, 64>}, {pipeline_mode = #tpu.pipeline_mode<synchronous>, transform_indices = @transform_2, window_bounds = array<i64: 64, 256>}, {pipeline_mode = #tpu.pipeline_mode<synchronous>, transform_indices = @transform_3, window_bounds = array<i64: 4, 72>}, {pipeline_mode = #tpu.pipeline_mode<synchronous>, transform_indices = @transform_4, window_bounds = array<i64: 9, 4, 4>}, {transform_indices = @transform_5, window_bounds = array<i64: 1, 4, 256>}]} {
    %c0 = arith.constant 0 : index
    %c0_0 = arith.constant 0 : index
    %c0_1 = arith.constant 0 : index
    %0 = vector.load %arg2[%c0, %c0_0, %c0_1] : memref<1x4x64xf32, #tpu.memory_space<vmem>>, vector<1x4x64xf32>
    %1 = vector.shape_cast %0 : vector<1x4x64xf32> to vector<4x64xf32>
    %c0_2 = arith.constant 0 : index
    %c0_3 = arith.constant 0 : index
    %2 = vector.load %arg3[%c0_2, %c0_3] : memref<64x256xf32, #tpu.memory_space<vmem>>, vector<64x256xf32>
    %cst = arith.constant dense<0.000000e+00> : vector<4x256xf32>
    %3 = tpu.matmul %1, %2, %cst {dimension_numbers = #tpu.dot_dimension_numbers<[1], [0], [0], [1], [0, 0, 1, 1], [], []>} : vector<4x64xf32>, vector<64x256xf32>, vector<4x256xf32> -> vector<4x256xf32>
    %c0_4 = arith.constant 0 : index
    %c0_5 = arith.constant 0 : index
    %c0_6 = arith.constant 0 : index
    %4 = vector.load %arg1[%c0_4, %c0_5, %c0_6] : memref<1x4x256xf32, #tpu.memory_space<vmem>>, vector<1x4x256xf32>
    %5 = vector.shape_cast %4 : vector<1x4x256xf32> to vector<4x256xf32>
    %6 = tpu.concatenate %5, %3 in 0 : vector<4x256xf32>, vector<4x256xf32> -> vector<8x256xf32>
    %7 = tpu.iota {dimensions = array<i32: 1>} : vector<1x256xi32>
    %c15_i32 = arith.constant 15 : i32
    %8 = vector.broadcast %c15_i32 : i32 to vector<1x256xi32>
    %9 = arith.andi %7, %8 : vector<1x256xi32>
    %c16_i32 = arith.constant 16 : i32
    %10 = vector.broadcast %c16_i32 : i32 to vector<1x256xi32>
    %11 = arith.cmpi sge, %7, %10 : vector<1x256xi32>
    %c240_i32 = arith.constant 240 : i32
    %12 = vector.broadcast %c240_i32 : i32 to vector<1x256xi32>
    %13 = arith.cmpi slt, %7, %12 : vector<1x256xi32>
    %c1_i32 = arith.constant 1 : i32
    %14 = vector.broadcast %c1_i32 : i32 to vector<1x256xi32>
    %15 = arith.cmpi sge, %9, %14 : vector<1x256xi32>
    %c14_i32 = arith.constant 14 : i32
    %16 = vector.broadcast %c14_i32 : i32 to vector<1x256xi32>
    %17 = arith.cmpi sle, %9, %16 : vector<1x256xi32>
    %18 = arith.andi %11, %15 : vector<1x256xi1>
    %19 = arith.andi %11, %17 : vector<1x256xi1>
    %20 = arith.andi %13, %15 : vector<1x256xi1>
    %21 = arith.andi %13, %17 : vector<1x256xi1>
    %c17_i32 = arith.constant 17 : i32
    %22 = tpu.dynamic_rotate %6 by %c17_i32 dim 1 : vector<8x256xf32>, i32 -> vector<8x256xf32>
    %cst_7 = arith.constant 0.000000e+00 : f32
    %23 = vector.shape_cast %18 : vector<1x256xi1> to vector<1x256xi1>
    %24 = vector.broadcast %23 : vector<1x256xi1> to vector<8x256xi1>
    %25 = vector.broadcast %cst_7 : f32 to vector<8x256xf32>
    %26 = arith.select %24, %22, %25 : vector<8x256xi1>, vector<8x256xf32>
    %c16_i32_8 = arith.constant 16 : i32
    %27 = tpu.dynamic_rotate %6 by %c16_i32_8 dim 1 : vector<8x256xf32>, i32 -> vector<8x256xf32>
    %cst_9 = arith.constant 0.000000e+00 : f32
    %28 = vector.shape_cast %11 : vector<1x256xi1> to vector<1x256xi1>
    %29 = vector.broadcast %28 : vector<1x256xi1> to vector<8x256xi1>
    %30 = vector.broadcast %cst_9 : f32 to vector<8x256xf32>
    %31 = arith.select %29, %27, %30 : vector<8x256xi1>, vector<8x256xf32>
    %c15_i32_10 = arith.constant 15 : i32
    %32 = tpu.dynamic_rotate %6 by %c15_i32_10 dim 1 : vector<8x256xf32>, i32 -> vector<8x256xf32>
    %cst_11 = arith.constant 0.000000e+00 : f32
    %33 = vector.shape_cast %19 : vector<1x256xi1> to vector<1x256xi1>
    %34 = vector.broadcast %33 : vector<1x256xi1> to vector<8x256xi1>
    %35 = vector.broadcast %cst_11 : f32 to vector<8x256xf32>
    %36 = arith.select %34, %32, %35 : vector<8x256xi1>, vector<8x256xf32>
    %c1_i32_12 = arith.constant 1 : i32
    %37 = tpu.dynamic_rotate %6 by %c1_i32_12 dim 1 : vector<8x256xf32>, i32 -> vector<8x256xf32>
    %cst_13 = arith.constant 0.000000e+00 : f32
    %38 = vector.shape_cast %15 : vector<1x256xi1> to vector<1x256xi1>
    %39 = vector.broadcast %38 : vector<1x256xi1> to vector<8x256xi1>
    %40 = vector.broadcast %cst_13 : f32 to vector<8x256xf32>
    %41 = arith.select %39, %37, %40 : vector<8x256xi1>, vector<8x256xf32>
    %c255_i32 = arith.constant 255 : i32
    %42 = tpu.dynamic_rotate %6 by %c255_i32 dim 1 : vector<8x256xf32>, i32 -> vector<8x256xf32>
    %cst_14 = arith.constant 0.000000e+00 : f32
    %43 = vector.shape_cast %17 : vector<1x256xi1> to vector<1x256xi1>
    %44 = vector.broadcast %43 : vector<1x256xi1> to vector<8x256xi1>
    %45 = vector.broadcast %cst_14 : f32 to vector<8x256xf32>
    %46 = arith.select %44, %42, %45 : vector<8x256xi1>, vector<8x256xf32>
    %c241_i32 = arith.constant 241 : i32
    %47 = tpu.dynamic_rotate %6 by %c241_i32 dim 1 : vector<8x256xf32>, i32 -> vector<8x256xf32>
    %cst_15 = arith.constant 0.000000e+00 : f32
    %48 = vector.shape_cast %20 : vector<1x256xi1> to vector<1x256xi1>
    %49 = vector.broadcast %48 : vector<1x256xi1> to vector<8x256xi1>
    %50 = vector.broadcast %cst_15 : f32 to vector<8x256xf32>
    %51 = arith.select %49, %47, %50 : vector<8x256xi1>, vector<8x256xf32>
    %c240_i32_16 = arith.constant 240 : i32
    %52 = tpu.dynamic_rotate %6 by %c240_i32_16 dim 1 : vector<8x256xf32>, i32 -> vector<8x256xf32>
    %cst_17 = arith.constant 0.000000e+00 : f32
    %53 = vector.shape_cast %13 : vector<1x256xi1> to vector<1x256xi1>
    %54 = vector.broadcast %53 : vector<1x256xi1> to vector<8x256xi1>
    %55 = vector.broadcast %cst_17 : f32 to vector<8x256xf32>
    %56 = arith.select %54, %52, %55 : vector<8x256xi1>, vector<8x256xf32>
    %c239_i32 = arith.constant 239 : i32
    %57 = tpu.dynamic_rotate %6 by %c239_i32 dim 1 : vector<8x256xf32>, i32 -> vector<8x256xf32>
    %cst_18 = arith.constant 0.000000e+00 : f32
    %58 = vector.shape_cast %21 : vector<1x256xi1> to vector<1x256xi1>
    %59 = vector.broadcast %58 : vector<1x256xi1> to vector<8x256xi1>
    %60 = vector.broadcast %cst_18 : f32 to vector<8x256xf32>
    %61 = arith.select %59, %57, %60 : vector<8x256xi1>, vector<8x256xf32>
    %62 = tpu.concatenate %26, %31, %36, %41, %6, %46, %51, %56, %61 in 0 : vector<8x256xf32>, vector<8x256xf32>, vector<8x256xf32>, vector<8x256xf32>, vector<8x256xf32>, vector<8x256xf32>, vector<8x256xf32>, vector<8x256xf32>, vector<8x256xf32> -> vector<72x256xf32>
    %c0_19 = arith.constant 0 : index
    %c0_20 = arith.constant 0 : index
    %63 = vector.load %arg4[%c0_19, %c0_20] : memref<4x72xf32, #tpu.memory_space<vmem>>, vector<4x72xf32>
    %cst_21 = arith.constant dense<0.000000e+00> : vector<4x256xf32>
    %64 = tpu.matmul %63, %62, %cst_21 {dimension_numbers = #tpu.dot_dimension_numbers<[1], [0], [0], [1], [0, 0, 1, 1], [], []>} : vector<4x72xf32>, vector<72x256xf32>, vector<4x256xf32> -> vector<4x256xf32>
    %cst_22 = arith.constant dense<0.000000e+00> : vector<4xf32>
    %65 = vector.multi_reduction <add>, %64, %cst_22 [1] : vector<4x256xf32> to vector<4xf32>
    %66 = vector.shape_cast %65 : vector<4xf32> to vector<4x1xf32>
    %67 = arith.mulf %64, %64 : vector<4x256xf32>
    %cst_23 = arith.constant dense<0.000000e+00> : vector<4xf32>
    %68 = vector.multi_reduction <add>, %67, %cst_23 [1] : vector<4x256xf32> to vector<4xf32>
    %69 = vector.shape_cast %68 : vector<4xf32> to vector<4x1xf32>
    %cst_24 = arith.constant 3.906250e-03 : f32
    %70 = vector.broadcast %cst_24 : f32 to vector<4x1xf32>
    %71 = arith.mulf %66, %70 : vector<4x1xf32>
    %cst_25 = arith.constant 3.906250e-03 : f32
    %72 = vector.broadcast %cst_25 : f32 to vector<4x1xf32>
    %73 = arith.mulf %69, %72 : vector<4x1xf32>
    %74 = arith.mulf %71, %71 : vector<4x1xf32>
    %75 = arith.subf %73, %74 : vector<4x1xf32>
    %cst_26 = arith.constant 0.000000e+00 : f32
    %76 = vector.broadcast %cst_26 : f32 to vector<4x1xf32>
    %77 = arith.maximumf %75, %76 : vector<4x1xf32>
    %78 = vector.broadcast %71 : vector<4x1xf32> to vector<4x256xf32>
    %79 = arith.subf %64, %78 : vector<4x256xf32>
    %cst_27 = arith.constant 9.99999974E-6 : f32
    %80 = vector.broadcast %cst_27 : f32 to vector<4x1xf32>
    %81 = arith.addf %77, %80 : vector<4x1xf32>
    %82 = math.rsqrt %81 : vector<4x1xf32>
    %83 = vector.broadcast %82 : vector<4x1xf32> to vector<4x256xf32>
    %84 = arith.mulf %79, %83 : vector<4x256xf32>
    %cst_28 = arith.constant 0.000000e+00 : f32
    %85 = vector.broadcast %cst_28 : f32 to vector<4x256xf32>
    %86 = arith.maximumf %84, %85 : vector<4x256xf32>
    %c0_29 = arith.constant 0 : index
    %c0_30 = arith.constant 0 : index
    %c0_31 = arith.constant 0 : index
    %87 = vector.load %arg5[%c0_29, %c0_30, %c0_31] : memref<9x4x4xf32, #tpu.memory_space<vmem>>, vector<9x4x4xf32>
    %88 = vector.extract_strided_slice %87 {offsets = [0, 0, 0], sizes = [1, 4, 4], strides = [1, 1, 1]} : vector<9x4x4xf32> to vector<1x4x4xf32>
    %89 = vector.shape_cast %88 : vector<1x4x4xf32> to vector<4x4xf32>
    %c17_i32_32 = arith.constant 17 : i32
    %90 = tpu.dynamic_rotate %86 by %c17_i32_32 dim 1 : vector<4x256xf32>, i32 -> vector<4x256xf32>
    %cst_33 = arith.constant 0.000000e+00 : f32
    %91 = vector.shape_cast %18 : vector<1x256xi1> to vector<1x256xi1>
    %92 = vector.broadcast %91 : vector<1x256xi1> to vector<4x256xi1>
    %93 = vector.broadcast %cst_33 : f32 to vector<4x256xf32>
    %94 = arith.select %92, %90, %93 : vector<4x256xi1>, vector<4x256xf32>
    %cst_34 = arith.constant dense<0.000000e+00> : vector<4x256xf32>
    %95 = tpu.matmul %89, %94, %cst_34 {dimension_numbers = #tpu.dot_dimension_numbers<[1], [0], [0], [1], [0, 0, 1, 1], [], []>} : vector<4x4xf32>, vector<4x256xf32>, vector<4x256xf32> -> vector<4x256xf32>
    %96 = vector.extract_strided_slice %87 {offsets = [1, 0, 0], sizes = [1, 4, 4], strides = [1, 1, 1]} : vector<9x4x4xf32> to vector<1x4x4xf32>
    %97 = vector.shape_cast %96 : vector<1x4x4xf32> to vector<4x4xf32>
    %c16_i32_35 = arith.constant 16 : i32
    %98 = tpu.dynamic_rotate %86 by %c16_i32_35 dim 1 : vector<4x256xf32>, i32 -> vector<4x256xf32>
    %cst_36 = arith.constant 0.000000e+00 : f32
    %99 = vector.shape_cast %11 : vector<1x256xi1> to vector<1x256xi1>
    %100 = vector.broadcast %99 : vector<1x256xi1> to vector<4x256xi1>
    %101 = vector.broadcast %cst_36 : f32 to vector<4x256xf32>
    %102 = arith.select %100, %98, %101 : vector<4x256xi1>, vector<4x256xf32>
    %cst_37 = arith.constant dense<0.000000e+00> : vector<4x256xf32>
    %103 = tpu.matmul %97, %102, %cst_37 {dimension_numbers = #tpu.dot_dimension_numbers<[1], [0], [0], [1], [0, 0, 1, 1], [], []>} : vector<4x4xf32>, vector<4x256xf32>, vector<4x256xf32> -> vector<4x256xf32>
    %104 = arith.addf %95, %103 : vector<4x256xf32>
    %105 = vector.extract_strided_slice %87 {offsets = [2, 0, 0], sizes = [1, 4, 4], strides = [1, 1, 1]} : vector<9x4x4xf32> to vector<1x4x4xf32>
    %106 = vector.shape_cast %105 : vector<1x4x4xf32> to vector<4x4xf32>
    %c15_i32_38 = arith.constant 15 : i32
    %107 = tpu.dynamic_rotate %86 by %c15_i32_38 dim 1 : vector<4x256xf32>, i32 -> vector<4x256xf32>
    %cst_39 = arith.constant 0.000000e+00 : f32
    %108 = vector.shape_cast %19 : vector<1x256xi1> to vector<1x256xi1>
    %109 = vector.broadcast %108 : vector<1x256xi1> to vector<4x256xi1>
    %110 = vector.broadcast %cst_39 : f32 to vector<4x256xf32>
    %111 = arith.select %109, %107, %110 : vector<4x256xi1>, vector<4x256xf32>
    %cst_40 = arith.constant dense<0.000000e+00> : vector<4x256xf32>
    %112 = tpu.matmul %106, %111, %cst_40 {dimension_numbers = #tpu.dot_dimension_numbers<[1], [0], [0], [1], [0, 0, 1, 1], [], []>} : vector<4x4xf32>, vector<4x256xf32>, vector<4x256xf32> -> vector<4x256xf32>
    %113 = arith.addf %104, %112 : vector<4x256xf32>
    %114 = vector.extract_strided_slice %87 {offsets = [3, 0, 0], sizes = [1, 4, 4], strides = [1, 1, 1]} : vector<9x4x4xf32> to vector<1x4x4xf32>
    %115 = vector.shape_cast %114 : vector<1x4x4xf32> to vector<4x4xf32>
    %c1_i32_41 = arith.constant 1 : i32
    %116 = tpu.dynamic_rotate %86 by %c1_i32_41 dim 1 : vector<4x256xf32>, i32 -> vector<4x256xf32>
    %cst_42 = arith.constant 0.000000e+00 : f32
    %117 = vector.shape_cast %15 : vector<1x256xi1> to vector<1x256xi1>
    %118 = vector.broadcast %117 : vector<1x256xi1> to vector<4x256xi1>
    %119 = vector.broadcast %cst_42 : f32 to vector<4x256xf32>
    %120 = arith.select %118, %116, %119 : vector<4x256xi1>, vector<4x256xf32>
    %cst_43 = arith.constant dense<0.000000e+00> : vector<4x256xf32>
    %121 = tpu.matmul %115, %120, %cst_43 {dimension_numbers = #tpu.dot_dimension_numbers<[1], [0], [0], [1], [0, 0, 1, 1], [], []>} : vector<4x4xf32>, vector<4x256xf32>, vector<4x256xf32> -> vector<4x256xf32>
    %122 = arith.addf %113, %121 : vector<4x256xf32>
    %123 = vector.extract_strided_slice %87 {offsets = [4, 0, 0], sizes = [1, 4, 4], strides = [1, 1, 1]} : vector<9x4x4xf32> to vector<1x4x4xf32>
    %124 = vector.shape_cast %123 : vector<1x4x4xf32> to vector<4x4xf32>
    %cst_44 = arith.constant dense<0.000000e+00> : vector<4x256xf32>
    %125 = tpu.matmul %124, %86, %cst_44 {dimension_numbers = #tpu.dot_dimension_numbers<[1], [0], [0], [1], [0, 0, 1, 1], [], []>} : vector<4x4xf32>, vector<4x256xf32>, vector<4x256xf32> -> vector<4x256xf32>
    %126 = arith.addf %122, %125 : vector<4x256xf32>
    %127 = vector.extract_strided_slice %87 {offsets = [5, 0, 0], sizes = [1, 4, 4], strides = [1, 1, 1]} : vector<9x4x4xf32> to vector<1x4x4xf32>
    %128 = vector.shape_cast %127 : vector<1x4x4xf32> to vector<4x4xf32>
    %c255_i32_45 = arith.constant 255 : i32
    %129 = tpu.dynamic_rotate %86 by %c255_i32_45 dim 1 : vector<4x256xf32>, i32 -> vector<4x256xf32>
    %cst_46 = arith.constant 0.000000e+00 : f32
    %130 = vector.shape_cast %17 : vector<1x256xi1> to vector<1x256xi1>
    %131 = vector.broadcast %130 : vector<1x256xi1> to vector<4x256xi1>
    %132 = vector.broadcast %cst_46 : f32 to vector<4x256xf32>
    %133 = arith.select %131, %129, %132 : vector<4x256xi1>, vector<4x256xf32>
    %cst_47 = arith.constant dense<0.000000e+00> : vector<4x256xf32>
    %134 = tpu.matmul %128, %133, %cst_47 {dimension_numbers = #tpu.dot_dimension_numbers<[1], [0], [0], [1], [0, 0, 1, 1], [], []>} : vector<4x4xf32>, vector<4x256xf32>, vector<4x256xf32> -> vector<4x256xf32>
    %135 = arith.addf %126, %134 : vector<4x256xf32>
    %136 = vector.extract_strided_slice %87 {offsets = [6, 0, 0], sizes = [1, 4, 4], strides = [1, 1, 1]} : vector<9x4x4xf32> to vector<1x4x4xf32>
    %137 = vector.shape_cast %136 : vector<1x4x4xf32> to vector<4x4xf32>
    %c241_i32_48 = arith.constant 241 : i32
    %138 = tpu.dynamic_rotate %86 by %c241_i32_48 dim 1 : vector<4x256xf32>, i32 -> vector<4x256xf32>
    %cst_49 = arith.constant 0.000000e+00 : f32
    %139 = vector.shape_cast %20 : vector<1x256xi1> to vector<1x256xi1>
    %140 = vector.broadcast %139 : vector<1x256xi1> to vector<4x256xi1>
    %141 = vector.broadcast %cst_49 : f32 to vector<4x256xf32>
    %142 = arith.select %140, %138, %141 : vector<4x256xi1>, vector<4x256xf32>
    %cst_50 = arith.constant dense<0.000000e+00> : vector<4x256xf32>
    %143 = tpu.matmul %137, %142, %cst_50 {dimension_numbers = #tpu.dot_dimension_numbers<[1], [0], [0], [1], [0, 0, 1, 1], [], []>} : vector<4x4xf32>, vector<4x256xf32>, vector<4x256xf32> -> vector<4x256xf32>
    %144 = arith.addf %135, %143 : vector<4x256xf32>
    %145 = vector.extract_strided_slice %87 {offsets = [7, 0, 0], sizes = [1, 4, 4], strides = [1, 1, 1]} : vector<9x4x4xf32> to vector<1x4x4xf32>
    %146 = vector.shape_cast %145 : vector<1x4x4xf32> to vector<4x4xf32>
    %c240_i32_51 = arith.constant 240 : i32
    %147 = tpu.dynamic_rotate %86 by %c240_i32_51 dim 1 : vector<4x256xf32>, i32 -> vector<4x256xf32>
    %cst_52 = arith.constant 0.000000e+00 : f32
    %148 = vector.shape_cast %13 : vector<1x256xi1> to vector<1x256xi1>
    %149 = vector.broadcast %148 : vector<1x256xi1> to vector<4x256xi1>
    %150 = vector.broadcast %cst_52 : f32 to vector<4x256xf32>
    %151 = arith.select %149, %147, %150 : vector<4x256xi1>, vector<4x256xf32>
    %cst_53 = arith.constant dense<0.000000e+00> : vector<4x256xf32>
    %152 = tpu.matmul %146, %151, %cst_53 {dimension_numbers = #tpu.dot_dimension_numbers<[1], [0], [0], [1], [0, 0, 1, 1], [], []>} : vector<4x4xf32>, vector<4x256xf32>, vector<4x256xf32> -> vector<4x256xf32>
    %153 = arith.addf %144, %152 : vector<4x256xf32>
    %154 = vector.extract_strided_slice %87 {offsets = [8, 0, 0], sizes = [1, 4, 4], strides = [1, 1, 1]} : vector<9x4x4xf32> to vector<1x4x4xf32>
    %155 = vector.shape_cast %154 : vector<1x4x4xf32> to vector<4x4xf32>
    %c239_i32_54 = arith.constant 239 : i32
    %156 = tpu.dynamic_rotate %86 by %c239_i32_54 dim 1 : vector<4x256xf32>, i32 -> vector<4x256xf32>
    %cst_55 = arith.constant 0.000000e+00 : f32
    %157 = vector.shape_cast %21 : vector<1x256xi1> to vector<1x256xi1>
    %158 = vector.broadcast %157 : vector<1x256xi1> to vector<4x256xi1>
    %159 = vector.broadcast %cst_55 : f32 to vector<4x256xf32>
    %160 = arith.select %158, %156, %159 : vector<4x256xi1>, vector<4x256xf32>
    %cst_56 = arith.constant dense<0.000000e+00> : vector<4x256xf32>
    %161 = tpu.matmul %155, %160, %cst_56 {dimension_numbers = #tpu.dot_dimension_numbers<[1], [0], [0], [1], [0, 0, 1, 1], [], []>} : vector<4x4xf32>, vector<4x256xf32>, vector<4x256xf32> -> vector<4x256xf32>
    %162 = arith.addf %153, %161 : vector<4x256xf32>
    %cst_57 = arith.constant dense<0.000000e+00> : vector<4xf32>
    %163 = vector.multi_reduction <add>, %162, %cst_57 [1] : vector<4x256xf32> to vector<4xf32>
    %164 = vector.shape_cast %163 : vector<4xf32> to vector<4x1xf32>
    %165 = arith.mulf %162, %162 : vector<4x256xf32>
    %cst_58 = arith.constant dense<0.000000e+00> : vector<4xf32>
    %166 = vector.multi_reduction <add>, %165, %cst_58 [1] : vector<4x256xf32> to vector<4xf32>
    %167 = vector.shape_cast %166 : vector<4xf32> to vector<4x1xf32>
    %cst_59 = arith.constant 3.906250e-03 : f32
    %168 = vector.broadcast %cst_59 : f32 to vector<4x1xf32>
    %169 = arith.mulf %164, %168 : vector<4x1xf32>
    %cst_60 = arith.constant 3.906250e-03 : f32
    %170 = vector.broadcast %cst_60 : f32 to vector<4x1xf32>
    %171 = arith.mulf %167, %170 : vector<4x1xf32>
    %172 = arith.mulf %169, %169 : vector<4x1xf32>
    %173 = arith.subf %171, %172 : vector<4x1xf32>
    %cst_61 = arith.constant 0.000000e+00 : f32
    %174 = vector.broadcast %cst_61 : f32 to vector<4x1xf32>
    %175 = arith.maximumf %173, %174 : vector<4x1xf32>
    %176 = vector.broadcast %169 : vector<4x1xf32> to vector<4x256xf32>
    %177 = arith.subf %162, %176 : vector<4x256xf32>
    %cst_62 = arith.constant 9.99999974E-6 : f32
    %178 = vector.broadcast %cst_62 : f32 to vector<4x1xf32>
    %179 = arith.addf %175, %178 : vector<4x1xf32>
    %180 = math.rsqrt %179 : vector<4x1xf32>
    %181 = vector.broadcast %180 : vector<4x1xf32> to vector<4x256xf32>
    %182 = arith.mulf %177, %181 : vector<4x256xf32>
    %cst_63 = arith.constant 0.000000e+00 : f32
    %183 = vector.broadcast %cst_63 : f32 to vector<4x256xf32>
    %184 = arith.maximumf %182, %183 : vector<4x256xf32>
    %c0_64 = arith.constant 0 : index
    %c0_65 = arith.constant 0 : index
    %c0_66 = arith.constant 0 : index
    %185 = vector.load %arg6[%c0_64, %c0_65, %c0_66] : memref<1x4x256xf32, #tpu.memory_space<vmem>>, vector<1x4x256xf32>
    %186 = vector.shape_cast %185 : vector<1x4x256xf32> to vector<4x256xf32>
    %187 = vector.shape_cast %184 : vector<4x256xf32> to vector<1x4x256xf32>
    tpu.vector_store %arg6[%c0_64, %c0_65, %c0_66], %187 {strides = array<i32>} : memref<1x4x256xf32, #tpu.memory_space<vmem>>, vector<1x4x256xf32>,
    return
  }
  func.func @transform_0(%arg0: i32) -> (i32, i32, i32) {
    %c0_i32 = arith.constant 0 : i32
    %c0_i32_0 = arith.constant 0 : i32
    %c0_i32_1 = arith.constant 0 : i32
    return %arg0, %c0_i32, %c0_i32_0 : i32, i32, i32
  }
  func.func @transform_1(%arg0: i32) -> (i32, i32, i32) {
    %c0_i32 = arith.constant 0 : i32
    %c0_i32_0 = arith.constant 0 : i32
    %c0_i32_1 = arith.constant 0 : i32
    return %arg0, %c0_i32, %c0_i32_0 : i32, i32, i32
  }
  func.func @transform_2(%arg0: i32) -> (i32, i32) {
    %c0_i32 = arith.constant 0 : i32
    %c0_i32_0 = arith.constant 0 : i32
    %c0_i32_1 = arith.constant 0 : i32
    return %c0_i32, %c0_i32_0 : i32, i32
  }
  func.func @transform_3(%arg0: i32) -> (i32, i32) {
    %c0_i32 = arith.constant 0 : i32
    %c0_i32_0 = arith.constant 0 : i32
    %c0_i32_1 = arith.constant 0 : i32
    return %c0_i32, %c0_i32_0 : i32, i32
  }
  func.func @transform_4(%arg0: i32) -> (i32, i32, i32) {
    %c0_i32 = arith.constant 0 : i32
    %c0_i32_0 = arith.constant 0 : i32
    %c0_i32_1 = arith.constant 0 : i32
    %c0_i32_2 = arith.constant 0 : i32
    return %c0_i32, %c0_i32_0, %c0_i32_1 : i32, i32, i32
  }
  func.func @transform_5(%arg0: i32) -> (i32, i32, i32) {
    %c0_i32 = arith.constant 0 : i32
    %c0_i32_0 = arith.constant 0 : i32
    %c0_i32_1 = arith.constant 0 : i32
    return %arg0, %c0_i32, %c0_i32_0 : i32, i32, i32
  }
}

</mosaic_0001>

<llo_original>
// kernel: tpu_custom_call.1
$region0: #{tpu_custom_call.1}
  #allocation0 [shape = 'u32[]', space=smem, size = 0x4, offset = 0x4, fixed_abs, tag = 'smem constant byte address 0x4 - core index']
  #allocation1 [shape = 'u32[72,128]{1,0:T(1,128)}', space=vmem, size = 0x9000, scoped, tag = 'internal scratch']
  %s0 = inlined_call_operand.vmem [shape: f32[2,4,256], index: 0, kind: input, shape index: {}]
  %s1 = inlined_call_operand.vmem [shape: f32[2,4,64], index: 1, kind: input, shape index: {}]
  %s2 = inlined_call_operand.hbm [shape: f32[64,256], index: 2, kind: input, shape index: {}]
  %s3 = inlined_call_operand.vmem [shape: f32[4,72], index: 3, kind: input, shape index: {}]
  %s4 = inlined_call_operand.vmem [shape: f32[9,4,4], index: 4, kind: input, shape index: {}]
  %s5 = inlined_call_operand.hbm [shape: f32[2,4,256], index: 5, kind: output, shape index: {}]
  %s6 = sld [smem:[#allocation0]]
  $region57: #{tpu_custom_call.1} parent=0
    _
  %s8 = ssub.s32 1, %s6
  %s9 = scalar_select 0, %s8, %s6
  $region1: #{tpu_custom_call.1} parent=0
    #allocation2 [shape = 'u8[65536]{0}', space=vmem, size = 0x10000, scoped, tag = 'input window, operand 2, single buffered']
    #allocation3 [shape = 's32[2]{0}', space=sflag, size = 0x8, scoped, tag = 'scoped memory for tpu_custom_call.1']
    #allocation4 [shape = 's32[2]{0}', space=sflag, size = 0x8, scoped, tag = 'scoped memory for tpu_custom_call.1']
    #allocation5 [shape = 'u8[8192]{0}', space=vmem, size = 0x2000, scoped, tag = 'output window, operand 0']
    %10 = vsyncpa [#allocation3], 0
    %11 = vsyncpa [#allocation4], 0
    %s12 = scalar_lea.sflag [#allocation4], 1
    %13 = vsyncpa %s12, 0
    loop: start=0, step=1, limit=4
    $region2: #{tpu_custom_call.1} parent=1 // loop_pre_header
      _
    $region3: #{tpu_custom_call.1} parent=1 // loop_header
      %s15 = sphi 0, %s19
      %p16 = scmp.ge.s32.totalorder %s15, 4
      %s25 = sphi 0, %s27
      %s28 = sphi 0, %s25
      %s29 = sphi 0, %s28
      %s45 = sphi 0, %s29
      %s51 = sphi 0, %s53
      %s54 = sphi 0, %s51
      %s55 = sphi 0, %s54
      %s71 = sphi 0, %s55
      %s75 = sphi 0, %s75
      %s77 = sphi 0, %s75
      %s78 = sphi 0, %s77
      %s92 = sphi 0, %s78
      %s96 = sphi 0, %s96
      %s98 = sphi 0, %s96
      %s99 = sphi 0, %s98
      %s113 = sphi 0, %s99
      %s117 = sphi 0, %s117
      %s119 = sphi 0, %s117
      %s120 = sphi 0, %s119
      %s134 = sphi 0, %s120
      %s140 = sphi 0, %s142
      %s143 = sphi 0, %s140
      %s144 = sphi 0, %s143
      %s160 = sphi 0, %s144
    $region4: #{tpu_custom_call.1} parent=1 // loop_header_branch
      %18 = sbr.rel (%p16) target = $region8
    $region5: #{tpu_custom_call.1} parent=1 // loop_body
      %s20 = ssub.s32 %s15, 1
      %s21 = ssub.s32 %s15, 2
      %s22 = sadd.s32 %s15, 1
      %s23 = ssub.s32 %s15, %s22
      %p24 = scmp.eq.s32.totalorder %s23, 0
      %s26 = sadd.s32 %s25, 1
      %s27 = scalar_select %p24, %s25, %s26
      %p30 = pneg %p24
      %p31 = scmp.eq.s32.totalorder %s15, 1
      %p32 = por %p30, %p31
      %p33 = scmp.ne.s32.totalorder %s25, %s28
      %p34 = scmp.eq.s32.totalorder %s15, 0
      %p35 = por %p33, %p34
      %p36 = scmp.ne.s32.totalorder %s25, %s28
      %p37 = scmp.eq.s32.totalorder %s20, 1
      %p38 = por %p36, %p37
      %p39 = scmp.ne.s32.totalorder %s28, %s29
      %p40 = scmp.eq.s32.totalorder %s20, 0
      %p41 = por %p39, %p40
      %p42 = scmp.ne.s32.totalorder %s28, %s29
      %p43 = scmp.eq.s32.totalorder %s21, 1
      %p44 = por %p42, %p43
      %p46 = scmp.ne.s32.totalorder %s29, %s45
      %p47 = scmp.eq.s32.totalorder %s21, 0
      %p48 = por %p46, %p47
      %s49 = ssub.s32 %s15, %s22
      %p50 = scmp.eq.s32.totalorder %s49, 0
      %s52 = sadd.s32 %s51, 1
      %s53 = scalar_select %p50, %s51, %s52
      %p56 = pneg %p50
      %p57 = scmp.eq.s32.totalorder %s15, 1
      %p58 = por %p56, %p57
      %p59 = scmp.ne.s32.totalorder %s51, %s54
      %p60 = scmp.eq.s32.totalorder %s15, 0
      %p61 = por %p59, %p60
      %p62 = scmp.ne.s32.totalorder %s51, %s54
      %p63 = scmp.eq.s32.totalorder %s20, 1
      %p64 = por %p62, %p63
      %p65 = scmp.ne.s32.totalorder %s54, %s55
      %p66 = scmp.eq.s32.totalorder %s20, 0
      %p67 = por %p65, %p66
      %p68 = scmp.ne.s32.totalorder %s54, %s55
      %p69 = scmp.eq.s32.totalorder %s21, 1
      %p70 = por %p68, %p69
      %p72 = scmp.ne.s32.totalorder %s55, %s71
      %p73 = scmp.eq.s32.totalorder %s21, 0
      %p74 = por %p72, %p73
      %s76 = sadd.s32 %s75, 1
      %p79 = scmp.eq.s32.totalorder %s15, 1
      %p80 = scmp.ne.s32.totalorder %s75, %s77
      %p81 = scmp.eq.s32.totalorder %s15, 0
      %p82 = por %p80, %p81
      %p83 = scmp.ne.s32.totalorder %s75, %s77
      %p84 = scmp.eq.s32.totalorder %s20, 1
      %p85 = por %p83, %p84
      %p86 = scmp.ne.s32.totalorder %s77, %s78
      %p87 = scmp.eq.s32.totalorder %s20, 0
      %p88 = por %p86, %p87
      %p89 = scmp.ne.s32.totalorder %s77, %s78
      %p90 = scmp.eq.s32.totalorder %s21, 1
      %p91 = por %p89, %p90
      %p93 = scmp.ne.s32.totalorder %s78, %s92
      %p94 = scmp.eq.s32.totalorder %s21, 0
      %p95 = por %p93, %p94
      %s97 = sadd.s32 %s96, 1
      %p100 = scmp.eq.s32.totalorder %s15, 1
      %p101 = scmp.ne.s32.totalorder %s96, %s98
      %p102 = scmp.eq.s32.totalorder %s15, 0
      %p103 = por %p101, %p102
      %p104 = scmp.ne.s32.totalorder %s96, %s98
      %p105 = scmp.eq.s32.totalorder %s20, 1
      %p106 = por %p104, %p105
      %p107 = scmp.ne.s32.totalorder %s98, %s99
      %p108 = scmp.eq.s32.totalorder %s20, 0
      %p109 = por %p107, %p108
      %p110 = scmp.ne.s32.totalorder %s98, %s99
      %p111 = scmp.eq.s32.totalorder %s21, 1
      %p112 = por %p110, %p111
      %p114 = scmp.ne.s32.totalorder %s99, %s113
      %p115 = scmp.eq.s32.totalorder %s21, 0
      %p116 = por %p114, %p115
      %s118 = sadd.s32 %s117, 1
      %p121 = scmp.eq.s32.totalorder %s15, 1
      %p122 = scmp.ne.s32.totalorder %s117, %s119
      %p123 = scmp.eq.s32.totalorder %s15, 0
      %p124 = por %p122, %p123
      %p125 = scmp.ne.s32.totalorder %s117, %s119
      %p126 = scmp.eq.s32.totalorder %s20, 1
      %p127 = por %p125, %p126
      %p128 = scmp.ne.s32.totalorder %s119, %s120
      %p129 = scmp.eq.s32.totalorder %s20, 0
      %p130 = por %p128, %p129
      %p131 = scmp.ne.s32.totalorder %s119, %s120
      %p132 = scmp.eq.s32.totalorder %s21, 1
      %p133 = por %p131, %p132
      %p135 = scmp.ne.s32.totalorder %s120, %s134
      %p136 = scmp.eq.s32.totalorder %s21, 0
      %p137 = por %p135, %p136
      %s138 = ssub.s32 %s15, %s22
      %p139 = scmp.eq.s32.totalorder %s138, 0
      %s141 = sadd.s32 %s140, 1
      %s142 = scalar_select %p139, %s140, %s141
      %p145 = pneg %p139
      %p146 = scmp.eq.s32.totalorder %s15, 1
      %p147 = por %p145, %p146
      %p148 = scmp.ne.s32.totalorder %s140, %s143
      %p149 = scmp.eq.s32.totalorder %s15, 0
      %p150 = por %p148, %p149
      %p151 = scmp.ne.s32.totalorder %s140, %s143
      %p152 = scmp.eq.s32.totalorder %s20, 1
      %p153 = por %p151, %p152
      %p154 = scmp.ne.s32.totalorder %s143, %s144
      %p155 = scmp.eq.s32.totalorder %s20, 0
      %p156 = por %p154, %p155
      %p157 = scmp.ne.s32.totalorder %s143, %s144
      %p158 = scmp.eq.s32.totalorder %s21, 1
      %p159 = por %p157, %p158
      %p161 = scmp.ne.s32.totalorder %s144, %s160
      %p162 = scmp.eq.s32.totalorder %s21, 0
      %p163 = por %p161, %p162
      %p164 = scmp.le.s32.totalorder 1, %s15
      %p165 = scmp.lt.s32.totalorder %s15, 3
      %p166 = pnand %p164, %p165
      %p167 = pneg %p166
      // Predicated region
      $region9: #{tpu_custom_call.1} parent=5 // pred_check
        _
      $region10: #{tpu_custom_call.1} parent=5 // pred_check_branch
        %169 = sbr.rel (%p166) target = $region12
      $region11: #{tpu_custom_call.1} parent=5 // pred_region
        %s170 = ssub.s32 %s15, 1
        // Predicated region
        $region13: #{tpu_custom_call.1} parent=11 // pred_check
          %p171 = pneg %p88
        $region14: #{tpu_custom_call.1} parent=11 // pred_check_branch
          %173 = sbr.rel (%p171) target = $region16
        $region15: #{tpu_custom_call.1} parent=11 // pred_region
          %175 = vsyncadd [#allocation3], 0
          %s176 = sshll.u32 %s2, 4
          %s177 = int_to_ptr.hbm [resolvable:$true] %s176
          %s178 = sshll.u32 [#allocation2], 4
          %s179 = int_to_ptr.vmem [resolvable:$true] %s178
          %184 = dma.hbm_to_vmem [thread:$0]  %s177, 2048, %s179, [#allocation3], 256, 256, 16
        $region16: #{tpu_custom_call.1} parent=11 // pred_fallthru
          _
        // Predicated region
        $region17: #{tpu_custom_call.1} parent=11 // pred_check
          %p185 = pneg %p109
        $region18: #{tpu_custom_call.1} parent=11 // pred_check_branch
          %187 = sbr.rel (%p185) target = $region20
        $region19: #{tpu_custom_call.1} parent=11 // pred_region
          _
        $region20: #{tpu_custom_call.1} parent=11 // pred_fallthru
          _
        // Predicated region
        $region21: #{tpu_custom_call.1} parent=11 // pred_check
          %p188 = pneg %p130
        $region22: #{tpu_custom_call.1} parent=11 // pred_check_branch
          %190 = sbr.rel (%p188) target = $region24
        $region23: #{tpu_custom_call.1} parent=11 // pred_region
          _
        $region24: #{tpu_custom_call.1} parent=11 // pred_fallthru
          _
      $region12: #{tpu_custom_call.1} parent=5 // pred_fallthru
        _
      %p191 = scmp.lt.s32.totalorder %s15, 2
      // Predicated region
      $region25: #{tpu_custom_call.1} parent=5 // pred_check
        %p192 = pneg %p191
      $region26: #{tpu_custom_call.1} parent=5 // pred_check_branch
        %194 = sbr.rel (%p192) target = $region28
      $region27: #{tpu_custom_call.1} parent=5 // pred_region
        // Predicated region
        $region29: #{tpu_custom_call.1} parent=27 // pred_check
          %p195 = pneg %p35
        $region30: #{tpu_custom_call.1} parent=27 // pred_check_branch
          %197 = sbr.rel (%p195) target = $region32
        $region31: #{tpu_custom_call.1} parent=27 // pred_region
          %p198 = scmp.lt.s32.totalorder %s15, 1
          %s199 = scalar_select %p198, %s15, 1
          %s200 = smul.addr %s199, 2
          %s201 = smul.addr %s200, 4
          %s202 = scalar_lea.vmem %s0, %s201
        $region32: #{tpu_custom_call.1} parent=27 // pred_fallthru
          _
        // Predicated region
        $region33: #{tpu_custom_call.1} parent=27 // pred_check
          %p203 = pneg %p61
        $region34: #{tpu_custom_call.1} parent=27 // pred_check_branch
          %205 = sbr.rel (%p203) target = $region36
        $region35: #{tpu_custom_call.1} parent=27 // pred_region
          %p206 = scmp.lt.s32.totalorder %s15, 1
          %s207 = scalar_select %p206, %s15, 1
          %s208 = smul.addr %s207, 4
          %s209 = scalar_lea.vmem %s1, %s208
        $region36: #{tpu_custom_call.1} parent=27 // pred_fallthru
          _
      $region28: #{tpu_custom_call.1} parent=5 // pred_fallthru
        _
      %p210 = scmp.le.s32.totalorder 1, %s15
      %p211 = scmp.lt.s32.totalorder %s15, 3
      %p212 = pnand %p210, %p211
      %p213 = pneg %p212
      // Predicated region
      $region37: #{tpu_custom_call.1} parent=5 // pred_check
        _
      $region38: #{tpu_custom_call.1} parent=5 // pred_check_branch
        %215 = sbr.rel (%p212) target = $region40
      $region39: #{tpu_custom_call.1} parent=5 // pred_region
        %s216 = ssub.s32 %s15, 1
        // Predicated region
        $region41: #{tpu_custom_call.1} parent=39 // pred_check
          %p217 = pneg %p88
        $region42: #{tpu_custom_call.1} parent=39 // pred_check_branch
          %219 = sbr.rel (%p217) target = $region44
        $region43: #{tpu_custom_call.1} parent=39 // pred_region
          %221 = dma.done [#allocation3], 2048
        $region44: #{tpu_custom_call.1} parent=39 // pred_fallthru
          _
        %p222 = scmp.lt.s32.totalorder %s20, 1
        %s223 = scalar_select %p222, %s20, 1
        %s224 = smul.addr %s223, 2
        %s225 = smul.addr %s224, 4
        %s226 = scalar_lea.vmem %s0, %s225
        %p227 = pneg %p41
        %p228 = pneg %p38
        %p229 = scmp.lt.s32.totalorder %s20, 1
        %s230 = scalar_select %p229, %s20, 1
        %s231 = smul.addr %s230, 4
        %s232 = scalar_lea.vmem %s1, %s231
        %p233 = pneg %p67
        %p234 = pneg %p64
        %p235 = pneg %p88
        %p236 = pneg %p85
        %p237 = pneg %p109
        %p238 = pneg %p106
        %p239 = pneg %p130
        %p240 = pneg %p127
        %p241 = pneg %p156
        %p242 = pneg %p153
        %s243 = sand.u32 %s143, 1
        %s244 = scalar_lea.sflag [#allocation4], %s243
        %s245 = sand.u32 %s143, 1
        %s246 = smul.addr %s245, 8
        %s247 = scalar_lea.vmem [#allocation5], %s246
        %p248 = scmp.lt.s32.totalorder %s20, 1
        %s249 = scalar_select %p248, %s20, 1
        %s250 = smul.addr %s249, 2
        %s251 = smul.addr %s250, 4
        %s252 = scalar_lea.vmem %s0, %s251
        %p253 = scmp.lt.s32.totalorder %s20, 1
        %s254 = scalar_select %p253, %s20, 1
        %s255 = smul.addr %s254, 4
        %s256 = scalar_lea.vmem %s1, %s255
        %v257 = vld [vmem:[%s256] sm:$0xf]
        %v258 = vld [vmem:[#allocation2] sm:$0xff]
        %v259 = vld [vmem:[#allocation2 + $0x8] sm:$0xff]
        %v260 = vld [vmem:[#allocation2 + $0x10] sm:$0xff]
        %v261 = vld [vmem:[#allocation2 + $0x18] sm:$0xff]
        %v262 = vld [vmem:[#allocation2 + $0x20] sm:$0xff]
        %v263 = vld [vmem:[#allocation2 + $0x28] sm:$0xff]
        %v264 = vld [vmem:[#allocation2 + $0x30] sm:$0xff]
        %v265 = vld [vmem:[#allocation2 + $0x38] sm:$0xff]
        %v266 = vld [vmem:[#allocation2 + $0x40] sm:$0xff]
        %v267 = vld [vmem:[#allocation2 + $0x48] sm:$0xff]
        %v268 = vld [vmem:[#allocation2 + $0x50] sm:$0xff]
        %v269 = vld [vmem:[#allocation2 + $0x58] sm:$0xff]
        %v270 = vld [vmem:[#allocation2 + $0x60] sm:$0xff]
        %v271 = vld [vmem:[#allocation2 + $0x68] sm:$0xff]
        %v272 = vld [vmem:[#allocation2 + $0x70] sm:$0xff]
        %v273 = vld [vmem:[#allocation2 + $0x78] sm:$0xff]
        %vm274 = vcmask 523264
        %v276 = vsel %vm274, %v257, 0
        %278 = vmatpush.msra.mxu0 0.0
        %279 = vmatpush.msra.mxu0 0.0
        %280 = vmatpush.msra.mxu0 0.0
        %281 = vmatpush.msra.mxu0 0.0
        %282 = vmatpush.msra.mxu0 0.0
        %283 = vmatpush.msra.mxu0 0.0
        %284 = vmatpush.msra.mxu0 0.0
        %285 = vmatpush.msra.mxu0 0.0
        %286 = vmatpush.msra.mxu0 %v272
        %287 = vmatpush.msra.mxu0 %v270
        %288 = vmatpush.msra.mxu0 %v268
        %289 = vmatpush.msra.mxu0 %v266
        %290 = vmatpush.msra.mxu0 %v264
        %291 = vmatpush.msra.mxu0 %v262
        %292 = vmatpush.msra.mxu0 %v260
        %293 = vmatpush.msra.mxu0 %v258
        %294 = vmatmul.f32.gmra.mxu0 %v276
        %v295 = vpop.f32.mrf.mxu0
        %v296 = vadd.f32 0.0, %v295
        %297 = vdwg.mxu0
        %298 = vmatpush.msra.mxu0 0.0
        %299 = vmatpush.msra.mxu0 0.0
        %300 = vmatpush.msra.mxu0 0.0
        %301 = vmatpush.msra.mxu0 0.0
        %302 = vmatpush.msra.mxu0 0.0
        %303 = vmatpush.msra.mxu0 0.0
        %304 = vmatpush.msra.mxu0 0.0
        %305 = vmatpush.msra.mxu0 0.0
        %306 = vmatpush.msra.mxu0 %v273
        %307 = vmatpush.msra.mxu0 %v271
        %308 = vmatpush.msra.mxu0 %v269
        %309 = vmatpush.msra.mxu0 %v267
        %310 = vmatpush.msra.mxu0 %v265
        %311 = vmatpush.msra.mxu0 %v263
        %312 = vmatpush.msra.mxu0 %v261
        %313 = vmatpush.msra.mxu0 %v259
        %314 = vmatmul.f32.gmra.mxu0 %v276
        %v315 = vpop.f32.mrf.mxu0
        %v316 = vadd.f32 0.0, %v315
        %317 = vdwg.mxu0
        %v318 = vld [vmem:[%s252] sm:$0xff]
        %320 = vst [vmem:[#allocation1] ss:$2 sm:$0xff] %v318
        %v321 = vld.sshfl [vmem:[#allocation1] sm:$0xff pattern:$0x75316420]
        %v322 = vld.sshfl [vmem:[#allocation1 + $0x8] sm:$0xff pattern:$0x75316420]
        %v327 = vrot.slane %v296, 4
        %v328 = vrot.slane %v316, 4
        %vm331 = vcmask 1043456
        %v332 = vsel %vm331, %v321, %v327
        %v333 = vsel %vm331, %v322, %v328
        %v334 = vlaneseq
        %v335 = vand.u32 %v334, 127
        %v336 = vadd.s32 %v335, 128
        %v337 = vand.u32 %v335, 15
        %v338 = vand.u32 %v336, 15
        %vm339 = vcmp.ge.s32.totalorder %v335, 16
        %vm340 = vcmp.ge.s32.totalorder %v336, 16
        %vm341 = vcmp.lt.s32.totalorder %v335, 240
        %vm342 = vcmp.lt.s32.totalorder %v336, 240
        %vm343 = vcmp.ge.s32.totalorder %v337, 1
        %vm344 = vcmp.ge.s32.totalorder %v338, 1
        %vm345 = vcmp.le.s32.totalorder %v337, 14
        %vm346 = vcmp.le.s32.totalorder %v338, 14
        %vm347 = vmand %vm339, %vm343
        %vm348 = vmand %vm340, %vm344
        %vm349 = vmand %vm339, %vm345
        %vm350 = vmand %vm340, %vm346
        %vm351 = vmand %vm341, %vm343
        %vm352 = vmand %vm342, %vm344
        %vm353 = vmand %vm341, %vm345
        %vm354 = vmand %vm342, %vm346
        %355 = vrot.lane.b32.xlu0 %v332, 17
        %v356 = vpop.permute.xlu0 %355
        %357 = vrot.lane.b32.xlu0 %v333, 17
        %v358 = vpop.permute.xlu0 %357
        %vm359 = vcmp.lt.s32.totalorder %v335, 17
        %v360 = vsel %vm359, %v356, %v358
        %v361 = vsel %vm359, %v358, %v356
        %v362 = vsel %vm347, 1, 0
        %v363 = vsel %vm348, 1, 0
        %vm364 = vcmp.eq.s32.totalorder %v362, 1
        %vm365 = vcmp.eq.s32.totalorder %v363, 1
        %v366 = vsel %vm364, %v361, 0.0
        %v367 = vsel %vm365, %v360, 0.0
        %368 = vrot.lane.b32.xlu0 %v332, 16
        %v369 = vpop.permute.xlu0 %368
        %370 = vrot.lane.b32.xlu0 %v333, 16
        %v371 = vpop.permute.xlu0 %370
        %vm372 = vcmp.lt.s32.totalorder %v335, 16
        %v373 = vsel %vm372, %v369, %v371
        %v374 = vsel %vm372, %v371, %v369
        %v375 = vsel %vm339, 1, 0
        %v376 = vsel %vm340, 1, 0
        %vm377 = vcmp.eq.s32.totalorder %v375, 1
        %vm378 = vcmp.eq.s32.totalorder %v376, 1
        %v379 = vsel %vm377, %v374, 0.0
        %v380 = vsel %vm378, %v373, 0.0
        %381 = vrot.lane.b32.xlu0 %v332, 15
        %v382 = vpop.permute.xlu0 %381
        %383 = vrot.lane.b32.xlu0 %v333, 15
        %v384 = vpop.permute.xlu0 %383
        %vm385 = vcmp.lt.s32.totalorder %v335, 15
        %v386 = vsel %vm385, %v382, %v384
        %v387 = vsel %vm385, %v384, %v382
        %v388 = vsel %vm349, 1, 0
        %v389 = vsel %vm350, 1, 0
        %vm390 = vcmp.eq.s32.totalorder %v388, 1
        %vm391 = vcmp.eq.s32.totalorder %v389, 1
        %v392 = vsel %vm390, %v387, 0.0
        %v393 = vsel %vm391, %v386, 0.0
        %394 = vrot.lane.b32.xlu0 %v332, 1
        %v395 = vpop.permute.xlu0 %394
        %396 = vrot.lane.b32.xlu0 %v333, 1
        %v397 = vpop.permute.xlu0 %396
        %vm398 = vcmp.lt.s32.totalorder %v335, 1
        %v399 = vsel %vm398, %v395, %v397
        %v400 = vsel %vm398, %v397, %v395
        %v401 = vsel %vm343, 1, 0
        %v402 = vsel %vm344, 1, 0
        %vm403 = vcmp.eq.s32.totalorder %v401, 1
        %vm404 = vcmp.eq.s32.totalorder %v402, 1
        %v405 = vsel %vm403, %v400, 0.0
        %v406 = vsel %vm404, %v399, 0.0
        %407 = vrot.lane.b32.xlu0 %v332, 127
        %v408 = vpop.permute.xlu0 %407
        %409 = vrot.lane.b32.xlu0 %v333, 127
        %v410 = vpop.permute.xlu0 %409
        %vm411 = vcmp.lt.s32.totalorder %v335, 127
        %v412 = vsel %vm411, %v408, %v410
        %v413 = vsel %vm411, %v410, %v408
        %v414 = vsel %vm345, 1, 0
        %v415 = vsel %vm346, 1, 0
        %vm416 = vcmp.eq.s32.totalorder %v414, 1
        %vm417 = vcmp.eq.s32.totalorder %v415, 1
        %v418 = vsel %vm416, %v412, 0.0
        %v419 = vsel %vm417, %v413, 0.0
        %420 = vrot.lane.b32.xlu0 %v332, 113
        %v421 = vpop.permute.xlu0 %420
        %422 = vrot.lane.b32.xlu0 %v333, 113
        %v423 = vpop.permute.xlu0 %422
        %vm424 = vcmp.lt.s32.totalorder %v335, 113
        %v425 = vsel %vm424, %v421, %v423
        %v426 = vsel %vm424, %v423, %v421
        %v427 = vsel %vm351, 1, 0
        %v428 = vsel %vm352, 1, 0
        %vm429 = vcmp.eq.s32.totalorder %v427, 1
        %vm430 = vcmp.eq.s32.totalorder %v428, 1
        %v431 = vsel %vm429, %v425, 0.0
        %v432 = vsel %vm430, %v426, 0.0
        %433 = vrot.lane.b32.xlu0 %v332, 112
        %v434 = vpop.permute.xlu0 %433
        %435 = vrot.lane.b32.xlu0 %v333, 112
        %v436 = vpop.permute.xlu0 %435
        %vm437 = vcmp.lt.s32.totalorder %v335, 112
        %v438 = vsel %vm437, %v434, %v436
        %v439 = vsel %vm437, %v436, %v434
        %v440 = vsel %vm341, 1, 0
        %v441 = vsel %vm342, 1, 0
        %vm442 = vcmp.eq.s32.totalorder %v440, 1
        %vm443 = vcmp.eq.s32.totalorder %v441, 1
        %v444 = vsel %vm442, %v438, 0.0
        %v445 = vsel %vm443, %v439, 0.0
        %446 = vrot.lane.b32.xlu0 %v332, 111
        %v447 = vpop.permute.xlu0 %446
        %448 = vrot.lane.b32.xlu0 %v333, 111
        %v449 = vpop.permute.xlu0 %448
        %vm450 = vcmp.lt.s32.totalorder %v335, 111
        %v451 = vsel %vm450, %v447, %v449
        %v452 = vsel %vm450, %v449, %v447
        %v453 = vsel %vm353, 1, 0
        %v454 = vsel %vm354, 1, 0
        %vm455 = vcmp.eq.s32.totalorder %v453, 1
        %vm456 = vcmp.eq.s32.totalorder %v454, 1
        %v457 = vsel %vm455, %v451, 0.0
        %v458 = vsel %vm456, %v452, 0.0
        %v459 = vld [vmem:[%s3] sm:$0xf]
        %vm460 = vcmask 588800
        %v462 = vsel %vm460, %v459, 0
        %464 = vmatpush.msra.mxu0 0.0
        %465 = vmatpush.msra.mxu0 0.0
        %466 = vmatpush.msra.mxu0 0.0
        %467 = vmatpush.msra.mxu0 0.0
        %468 = vmatpush.msra.mxu0 0.0
        %469 = vmatpush.msra.mxu0 0.0
        %470 = vmatpush.msra.mxu0 0.0
        %471 = vmatpush.msra.mxu0 %v457
        %472 = vmatpush.msra.mxu0 %v444
        %473 = vmatpush.msra.mxu0 %v431
        %474 = vmatpush.msra.mxu0 %v418
        %475 = vmatpush.msra.mxu0 %v332
        %476 = vmatpush.msra.mxu0 %v405
        %477 = vmatpush.msra.mxu0 %v392
        %478 = vmatpush.msra.mxu0 %v379
        %479 = vmatpush.msra.mxu0 %v366
        %480 = vmatmul.f32.gmra.mxu0 %v462
        %v481 = vpop.f32.mrf.mxu0
        %v482 = vadd.f32 0.0, %v481
        %483 = vdwg.mxu0
        %484 = vmatpush.msra.mxu0 0.0
        %485 = vmatpush.msra.mxu0 0.0
        %486 = vmatpush.msra.mxu0 0.0
        %487 = vmatpush.msra.mxu0 0.0
        %488 = vmatpush.msra.mxu0 0.0
        %489 = vmatpush.msra.mxu0 0.0
        %490 = vmatpush.msra.mxu0 0.0
        %491 = vmatpush.msra.mxu0 %v458
        %492 = vmatpush.msra.mxu0 %v445
        %493 = vmatpush.msra.mxu0 %v432
        %494 = vmatpush.msra.mxu0 %v419
        %495 = vmatpush.msra.mxu0 %v333
        %496 = vmatpush.msra.mxu0 %v406
        %497 = vmatpush.msra.mxu0 %v393
        %498 = vmatpush.msra.mxu0 %v380
        %499 = vmatpush.msra.mxu0 %v367
        %500 = vmatmul.f32.gmra.mxu0 %v462
        %v501 = vpop.f32.mrf.mxu0
        %v502 = vadd.f32 0.0, %v501
        %503 = vdwg.mxu0
        %v504 = vsel %vm331, %v482, 0.0
        %v505 = vsel %vm331, %v502, 0.0
        %v506 = vadd.f32 %v504, %v505
        %507 = vadd.xlane.f32.xlu0 %v506
        %v508 = vpop.xlane.xlu0 %507
        %v509 = vmul.f32 %v482, %v482
        %v510 = vmul.f32 %v502, %v502
        %v511 = vsel %vm331, %v509, 0.0
        %v512 = vsel %vm331, %v510, 0.0
        %v513 = vadd.f32 %v511, %v512
        %514 = vadd.xlane.f32.xlu0 %v513
        %v515 = vpop.xlane.xlu0 %514
        %v516 = vmul.f32 %v508, 0.00390625
        %v517 = vmul.f32 %v515, 0.00390625
        %v518 = vmul.f32 %v516, %v516
        %v519 = vsub.f32 %v517, %v518
        %v520 = vmax.f32 %v519, 0.0
        %v521 = vsub.f32 %v482, %v516
        %v522 = vsub.f32 %v502, %v516
        %v523 = vadd.f32 %v520, 1e-05
        %v524 = vrsqrt.pop %v523
        %v525 = vmul.f32 %v524, %v523
        %v526 = vmul.f32 %v525, %v524
        %v527 = vmul.f32 0.5, %v526
        %v528 = vsub.f32 1.5, %v527
        %v529 = vmul.f32 %v524, %v528
        %vm530 = vweird.f32 %v523
        %vm531 = vweird.f32 %v524
        %vm532 = vmor %vm530, %vm531
        %v533 = vsel %vm532, %v524, %v529
        %v534 = vmul.f32 %v521, %v533
        %v535 = vmul.f32 %v522, %v533
        %v536 = vmax.f32 %v534, 0.0
        %v537 = vmax.f32 %v535, 0.0
        %v538 = vld [vmem:[%s4] sm:$0xf]
        %v539 = vld [vmem:[%s4 + $0x4] sm:$0xf]
        %v540 = vld [vmem:[%s4 + $0x8] sm:$0xf]
        %v541 = vld [vmem:[%s4 + $0xc] sm:$0xf]
        %v542 = vld [vmem:[%s4 + $0x10] sm:$0xf]
        %v543 = vld [vmem:[%s4 + $0x14] sm:$0xf]
        %v544 = vld [vmem:[%s4 + $0x18] sm:$0xf]
        %v545 = vld [vmem:[%s4 + $0x1c] sm:$0xf]
        %v546 = vld [vmem:[%s4 + $0x20] sm:$0xf]
        %547 = vrot.lane.b32.xlu0 %v536, 17
        %v548 = vpop.permute.xlu0 %547
        %549 = vrot.lane.b32.xlu0 %v537, 17
        %v550 = vpop.permute.xlu0 %549
        %v551 = vsel %vm359, %v548, %v550
        %v552 = vsel %vm359, %v550, %v548
        %v553 = vsel %vm364, %v552, 0.0
        %v554 = vsel %vm365, %v551, 0.0
        %555 = vrot.lane.b32.xlu0 %v536, 16
        %v556 = vpop.permute.xlu0 %555
        %557 = vrot.lane.b32.xlu0 %v537, 16
        %v558 = vpop.permute.xlu0 %557
        %v559 = vsel %vm372, %v556, %v558
        %v560 = vsel %vm372, %v558, %v556
        %v561 = vsel %vm377, %v560, 0.0
        %v562 = vsel %vm378, %v559, 0.0
        %vm563 = vcmask 31744
        %v565 = vsel %vm563, %v539, 0
        %v568 = vsel %vm331, %v561, 0
        %v571 = vsel %vm331, %v562, 0
        %573 = vmatpush.msra.mxu0 0.0
        %574 = vmatpush.msra.mxu0 0.0
        %575 = vmatpush.msra.mxu0 0.0
        %576 = vmatpush.msra.mxu0 0.0
        %577 = vmatpush.msra.mxu0 0.0
        %578 = vmatpush.msra.mxu0 0.0
        %579 = vmatpush.msra.mxu0 0.0
        %580 = vmatpush.msra.mxu0 0.0
        %581 = vmatpush.msra.mxu0 0.0
        %582 = vmatpush.msra.mxu0 0.0
        %583 = vmatpush.msra.mxu0 0.0
        %584 = vmatpush.msra.mxu0 0.0
        %585 = vmatpush.msra.mxu0 0.0
        %586 = vmatpush.msra.mxu0 0.0
        %587 = vmatpush.msra.mxu0 0.0
        %588 = vmatpush.msra.mxu0 %v568
        %589 = vmatmul.f32.gmra.mxu0 %v565
        %v590 = vpop.f32.mrf.mxu0
        %v591 = vadd.f32 0.0, %v590
        %592 = vdwg.mxu0
        %593 = vmatpush.msra.mxu0 0.0
        %594 = vmatpush.msra.mxu0 0.0
        %595 = vmatpush.msra.mxu0 0.0
        %596 = vmatpush.msra.mxu0 0.0
        %597 = vmatpush.msra.mxu0 0.0
        %598 = vmatpush.msra.mxu0 0.0
        %599 = vmatpush.msra.mxu0 0.0
        %600 = vmatpush.msra.mxu0 0.0
        %601 = vmatpush.msra.mxu0 0.0
        %602 = vmatpush.msra.mxu0 0.0
        %603 = vmatpush.msra.mxu0 0.0
        %604 = vmatpush.msra.mxu0 0.0
        %605 = vmatpush.msra.mxu0 0.0
        %606 = vmatpush.msra.mxu0 0.0
        %607 = vmatpush.msra.mxu0 0.0
        %608 = vmatpush.msra.mxu0 %v571
        %609 = vmatmul.f32.gmra.mxu0 %v565
        %v610 = vpop.f32.mrf.mxu0
        %v611 = vadd.f32 0.0, %v610
        %612 = vdwg.mxu0
        %v614 = vsel %vm563, %v538, 0
        %v617 = vsel %vm331, %v553, 0
        %v620 = vsel %vm331, %v554, 0
        %622 = vmatpush.msra.mxu0 0.0
        %623 = vmatpush.msra.mxu0 0.0
        %624 = vmatpush.msra.mxu0 0.0
        %625 = vmatpush.msra.mxu0 0.0
        %626 = vmatpush.msra.mxu0 0.0
        %627 = vmatpush.msra.mxu0 0.0
        %628 = vmatpush.msra.mxu0 0.0
        %629 = vmatpush.msra.mxu0 0.0
        %630 = vmatpush.msra.mxu0 0.0
        %631 = vmatpush.msra.mxu0 0.0
        %632 = vmatpush.msra.mxu0 0.0
        %633 = vmatpush.msra.mxu0 0.0
        %634 = vmatpush.msra.mxu0 0.0
        %635 = vmatpush.msra.mxu0 0.0
        %636 = vmatpush.msra.mxu0 0.0
        %637 = vmatpush.msra.mxu0 %v617
        %638 = vmatmul.f32.gmra.mxu0 %v614
        %v639 = vpop.f32.mrf.mxu0
        %v640 = vadd.f32 %v591, %v639
        %641 = vdwg.mxu0
        %642 = vmatpush.msra.mxu0 0.0
        %643 = vmatpush.msra.mxu0 0.0
        %644 = vmatpush.msra.mxu0 0.0
        %645 = vmatpush.msra.mxu0 0.0
        %646 = vmatpush.msra.mxu0 0.0
        %647 = vmatpush.msra.mxu0 0.0
        %648 = vmatpush.msra.mxu0 0.0
        %649 = vmatpush.msra.mxu0 0.0
        %650 = vmatpush.msra.mxu0 0.0
        %651 = vmatpush.msra.mxu0 0.0
        %652 = vmatpush.msra.mxu0 0.0
        %653 = vmatpush.msra.mxu0 0.0
        %654 = vmatpush.msra.mxu0 0.0
        %655 = vmatpush.msra.mxu0 0.0
        %656 = vmatpush.msra.mxu0 0.0
        %657 = vmatpush.msra.mxu0 %v620
        %658 = vmatmul.f32.gmra.mxu0 %v614
        %v659 = vpop.f32.mrf.mxu0
        %v660 = vadd.f32 %v611, %v659
        %661 = vdwg.mxu0
        %662 = vrot.lane.b32.xlu0 %v536, 15
        %v663 = vpop.permute.xlu0 %662
        %664 = vrot.lane.b32.xlu0 %v537, 15
        %v665 = vpop.permute.xlu0 %664
        %v666 = vsel %vm385, %v663, %v665
        %v667 = vsel %vm385, %v665, %v663
        %v668 = vsel %vm390, %v667, 0.0
        %v669 = vsel %vm391, %v666, 0.0
        %v671 = vsel %vm563, %v540, 0
        %v674 = vsel %vm331, %v668, 0
        %v677 = vsel %vm331, %v669, 0
        %679 = vmatpush.msra.mxu0 0.0
        %680 = vmatpush.msra.mxu0 0.0
        %681 = vmatpush.msra.mxu0 0.0
        %682 = vmatpush.msra.mxu0 0.0
        %683 = vmatpush.msra.mxu0 0.0
        %684 = vmatpush.msra.mxu0 0.0
        %685 = vmatpush.msra.mxu0 0.0
        %686 = vmatpush.msra.mxu0 0.0
        %687 = vmatpush.msra.mxu0 0.0
        %688 = vmatpush.msra.mxu0 0.0
        %689 = vmatpush.msra.mxu0 0.0
        %690 = vmatpush.msra.mxu0 0.0
        %691 = vmatpush.msra.mxu0 0.0
        %692 = vmatpush.msra.mxu0 0.0
        %693 = vmatpush.msra.mxu0 0.0
        %694 = vmatpush.msra.mxu0 %v674
        %695 = vmatmul.f32.gmra.mxu0 %v671
        %v696 = vpop.f32.mrf.mxu0
        %v697 = vadd.f32 0.0, %v696
        %698 = vdwg.mxu0
        %699 = vmatpush.msra.mxu0 0.0
        %700 = vmatpush.msra.mxu0 0.0
        %701 = vmatpush.msra.mxu0 0.0
        %702 = vmatpush.msra.mxu0 0.0
        %703 = vmatpush.msra.mxu0 0.0
        %704 = vmatpush.msra.mxu0 0.0
        %705 = vmatpush.msra.mxu0 0.0
        %706 = vmatpush.msra.mxu0 0.0
        %707 = vmatpush.msra.mxu0 0.0
        %708 = vmatpush.msra.mxu0 0.0
        %709 = vmatpush.msra.mxu0 0.0
        %710 = vmatpush.msra.mxu0 0.0
        %711 = vmatpush.msra.mxu0 0.0
        %712 = vmatpush.msra.mxu0 0.0
        %713 = vmatpush.msra.mxu0 0.0
        %714 = vmatpush.msra.mxu0 %v677
        %715 = vmatmul.f32.gmra.mxu0 %v671
        %v716 = vpop.f32.mrf.mxu0
        %v717 = vadd.f32 0.0, %v716
        %718 = vdwg.mxu0
        %v719 = vadd.f32 %v640, %v697
        %v720 = vadd.f32 %v660, %v717
        %721 = vrot.lane.b32.xlu0 %v536, 1
        %v722 = vpop.permute.xlu0 %721
        %723 = vrot.lane.b32.xlu0 %v537, 1
        %v724 = vpop.permute.xlu0 %723
        %v725 = vsel %vm398, %v722, %v724
        %v726 = vsel %vm398, %v724, %v722
        %v727 = vsel %vm403, %v726, 0.0
        %v728 = vsel %vm404, %v725, 0.0
        %v730 = vsel %vm563, %v541, 0
        %v733 = vsel %vm331, %v727, 0
        %v736 = vsel %vm331, %v728, 0
        %738 = vmatpush.msra.mxu0 0.0
        %739 = vmatpush.msra.mxu0 0.0
        %740 = vmatpush.msra.mxu0 0.0
        %741 = vmatpush.msra.mxu0 0.0
        %742 = vmatpush.msra.mxu0 0.0
        %743 = vmatpush.msra.mxu0 0.0
        %744 = vmatpush.msra.mxu0 0.0
        %745 = vmatpush.msra.mxu0 0.0
        %746 = vmatpush.msra.mxu0 0.0
        %747 = vmatpush.msra.mxu0 0.0
        %748 = vmatpush.msra.mxu0 0.0
        %749 = vmatpush.msra.mxu0 0.0
        %750 = vmatpush.msra.mxu0 0.0
        %751 = vmatpush.msra.mxu0 0.0
        %752 = vmatpush.msra.mxu0 0.0
        %753 = vmatpush.msra.mxu0 %v733
        %754 = vmatmul.f32.gmra.mxu0 %v730
        %v755 = vpop.f32.mrf.mxu0
        %v756 = vadd.f32 0.0, %v755
        %757 = vdwg.mxu0
        %758 = vmatpush.msra.mxu0 0.0
        %759 = vmatpush.msra.mxu0 0.0
        %760 = vmatpush.msra.mxu0 0.0
        %761 = vmatpush.msra.mxu0 0.0
        %762 = vmatpush.msra.mxu0 0.0
        %763 = vmatpush.msra.mxu0 0.0
        %764 = vmatpush.msra.mxu0 0.0
        %765 = vmatpush.msra.mxu0 0.0
        %766 = vmatpush.msra.mxu0 0.0
        %767 = vmatpush.msra.mxu0 0.0
        %768 = vmatpush.msra.mxu0 0.0
        %769 = vmatpush.msra.mxu0 0.0
        %770 = vmatpush.msra.mxu0 0.0
        %771 = vmatpush.msra.mxu0 0.0
        %772 = vmatpush.msra.mxu0 0.0
        %773 = vmatpush.msra.mxu0 %v736
        %774 = vmatmul.f32.gmra.mxu0 %v730
        %v775 = vpop.f32.mrf.mxu0
        %v776 = vadd.f32 0.0, %v775
        %777 = vdwg.mxu0
        %v778 = vadd.f32 %v719, %v756
        %v779 = vadd.f32 %v720, %v776
        %v781 = vsel %vm563, %v542, 0
        %v784 = vsel %vm331, %v536, 0
        %v787 = vsel %vm331, %v537, 0
        %789 = vmatpush.msra.mxu0 0.0
        %790 = vmatpush.msra.mxu0 0.0
        %791 = vmatpush.msra.mxu0 0.0
        %792 = vmatpush.msra.mxu0 0.0
        %793 = vmatpush.msra.mxu0 0.0
        %794 = vmatpush.msra.mxu0 0.0
        %795 = vmatpush.msra.mxu0 0.0
        %796 = vmatpush.msra.mxu0 0.0
        %797 = vmatpush.msra.mxu0 0.0
        %798 = vmatpush.msra.mxu0 0.0
        %799 = vmatpush.msra.mxu0 0.0
        %800 = vmatpush.msra.mxu0 0.0
        %801 = vmatpush.msra.mxu0 0.0
        %802 = vmatpush.msra.mxu0 0.0
        %803 = vmatpush.msra.mxu0 0.0
        %804 = vmatpush.msra.mxu0 %v784
        %805 = vmatmul.f32.gmra.mxu0 %v781
        %v806 = vpop.f32.mrf.mxu0
        %v807 = vadd.f32 0.0, %v806
        %808 = vdwg.mxu0
        %809 = vmatpush.msra.mxu0 0.0
        %810 = vmatpush.msra.mxu0 0.0
        %811 = vmatpush.msra.mxu0 0.0
        %812 = vmatpush.msra.mxu0 0.0
        %813 = vmatpush.msra.mxu0 0.0
        %814 = vmatpush.msra.mxu0 0.0
        %815 = vmatpush.msra.mxu0 0.0
        %816 = vmatpush.msra.mxu0 0.0
        %817 = vmatpush.msra.mxu0 0.0
        %818 = vmatpush.msra.mxu0 0.0
        %819 = vmatpush.msra.mxu0 0.0
        %820 = vmatpush.msra.mxu0 0.0
        %821 = vmatpush.msra.mxu0 0.0
        %822 = vmatpush.msra.mxu0 0.0
        %823 = vmatpush.msra.mxu0 0.0
        %824 = vmatpush.msra.mxu0 %v787
        %825 = vmatmul.f32.gmra.mxu0 %v781
        %v826 = vpop.f32.mrf.mxu0
        %v827 = vadd.f32 0.0, %v826
        %828 = vdwg.mxu0
        %v829 = vadd.f32 %v778, %v807
        %v830 = vadd.f32 %v779, %v827
        %831 = vrot.lane.b32.xlu0 %v536, 127
        %v832 = vpop.permute.xlu0 %831
        %833 = vrot.lane.b32.xlu0 %v537, 127
        %v834 = vpop.permute.xlu0 %833
        %v835 = vsel %vm411, %v832, %v834
        %v836 = vsel %vm411, %v834, %v832
        %v837 = vsel %vm416, %v835, 0.0
        %v838 = vsel %vm417, %v836, 0.0
        %v840 = vsel %vm563, %v543, 0
        %v843 = vsel %vm331, %v837, 0
        %v846 = vsel %vm331, %v838, 0
        %848 = vmatpush.msra.mxu0 0.0
        %849 = vmatpush.msra.mxu0 0.0
        %850 = vmatpush.msra.mxu0 0.0
        %851 = vmatpush.msra.mxu0 0.0
        %852 = vmatpush.msra.mxu0 0.0
        %853 = vmatpush.msra.mxu0 0.0
        %854 = vmatpush.msra.mxu0 0.0
        %855 = vmatpush.msra.mxu0 0.0
        %856 = vmatpush.msra.mxu0 0.0
        %857 = vmatpush.msra.mxu0 0.0
        %858 = vmatpush.msra.mxu0 0.0
        %859 = vmatpush.msra.mxu0 0.0
        %860 = vmatpush.msra.mxu0 0.0
        %861 = vmatpush.msra.mxu0 0.0
        %862 = vmatpush.msra.mxu0 0.0
        %863 = vmatpush.msra.mxu0 %v843
        %864 = vmatmul.f32.gmra.mxu0 %v840
        %v865 = vpop.f32.mrf.mxu0
        %v866 = vadd.f32 0.0, %v865
        %867 = vdwg.mxu0
        %868 = vmatpush.msra.mxu0 0.0
        %869 = vmatpush.msra.mxu0 0.0
        %870 = vmatpush.msra.mxu0 0.0
        %871 = vmatpush.msra.mxu0 0.0
        %872 = vmatpush.msra.mxu0 0.0
        %873 = vmatpush.msra.mxu0 0.0
        %874 = vmatpush.msra.mxu0 0.0
        %875 = vmatpush.msra.mxu0 0.0
        %876 = vmatpush.msra.mxu0 0.0
        %877 = vmatpush.msra.mxu0 0.0
        %878 = vmatpush.msra.mxu0 0.0
        %879 = vmatpush.msra.mxu0 0.0
        %880 = vmatpush.msra.mxu0 0.0
        %881 = vmatpush.msra.mxu0 0.0
        %882 = vmatpush.msra.mxu0 0.0
        %883 = vmatpush.msra.mxu0 %v846
        %884 = vmatmul.f32.gmra.mxu0 %v840
        %v885 = vpop.f32.mrf.mxu0
        %v886 = vadd.f32 0.0, %v885
        %887 = vdwg.mxu0
        %v888 = vadd.f32 %v829, %v866
        %v889 = vadd.f32 %v830, %v886
        %890 = vrot.lane.b32.xlu0 %v536, 113
        %v891 = vpop.permute.xlu0 %890
        %892 = vrot.lane.b32.xlu0 %v537, 113
        %v893 = vpop.permute.xlu0 %892
        %v894 = vsel %vm424, %v891, %v893
        %v895 = vsel %vm424, %v893, %v891
        %v896 = vsel %vm429, %v894, 0.0
        %v897 = vsel %vm430, %v895, 0.0
        %v899 = vsel %vm563, %v544, 0
        %v902 = vsel %vm331, %v896, 0
        %v905 = vsel %vm331, %v897, 0
        %907 = vmatpush.msra.mxu0 0.0
        %908 = vmatpush.msra.mxu0 0.0
        %909 = vmatpush.msra.mxu0 0.0
        %910 = vmatpush.msra.mxu0 0.0
        %911 = vmatpush.msra.mxu0 0.0
        %912 = vmatpush.msra.mxu0 0.0
        %913 = vmatpush.msra.mxu0 0.0
        %914 = vmatpush.msra.mxu0 0.0
        %915 = vmatpush.msra.mxu0 0.0
        %916 = vmatpush.msra.mxu0 0.0
        %917 = vmatpush.msra.mxu0 0.0
        %918 = vmatpush.msra.mxu0 0.0
        %919 = vmatpush.msra.mxu0 0.0
        %920 = vmatpush.msra.mxu0 0.0
        %921 = vmatpush.msra.mxu0 0.0
        %922 = vmatpush.msra.mxu0 %v902
        %923 = vmatmul.f32.gmra.mxu0 %v899
        %v924 = vpop.f32.mrf.mxu0
        %v925 = vadd.f32 0.0, %v924
        %926 = vdwg.mxu0
        %927 = vmatpush.msra.mxu0 0.0
        %928 = vmatpush.msra.mxu0 0.0
        %929 = vmatpush.msra.mxu0 0.0
        %930 = vmatpush.msra.mxu0 0.0
        %931 = vmatpush.msra.mxu0 0.0
        %932 = vmatpush.msra.mxu0 0.0
        %933 = vmatpush.msra.mxu0 0.0
        %934 = vmatpush.msra.mxu0 0.0
        %935 = vmatpush.msra.mxu0 0.0
        %936 = vmatpush.msra.mxu0 0.0
        %937 = vmatpush.msra.mxu0 0.0
        %938 = vmatpush.msra.mxu0 0.0
        %939 = vmatpush.msra.mxu0 0.0
        %940 = vmatpush.msra.mxu0 0.0
        %941 = vmatpush.msra.mxu0 0.0
        %942 = vmatpush.msra.mxu0 %v905
        %943 = vmatmul.f32.gmra.mxu0 %v899
        %v944 = vpop.f32.mrf.mxu0
        %v945 = vadd.f32 0.0, %v944
        %946 = vdwg.mxu0
        %v947 = vadd.f32 %v888, %v925
        %v948 = vadd.f32 %v889, %v945
        %949 = vrot.lane.b32.xlu0 %v536, 112
        %v950 = vpop.permute.xlu0 %949
        %951 = vrot.lane.b32.xlu0 %v537, 112
        %v952 = vpop.permute.xlu0 %951
        %v953 = vsel %vm437, %v950, %v952
        %v954 = vsel %vm437, %v952, %v950
        %v955 = vsel %vm442, %v953, 0.0
        %v956 = vsel %vm443, %v954, 0.0
        %v958 = vsel %vm563, %v545, 0
        %v961 = vsel %vm331, %v955, 0
        %v964 = vsel %vm331, %v956, 0
        %966 = vmatpush.msra.mxu0 0.0
        %967 = vmatpush.msra.mxu0 0.0
        %968 = vmatpush.msra.mxu0 0.0
        %969 = vmatpush.msra.mxu0 0.0
        %970 = vmatpush.msra.mxu0 0.0
        %971 = vmatpush.msra.mxu0 0.0
        %972 = vmatpush.msra.mxu0 0.0
        %973 = vmatpush.msra.mxu0 0.0
        %974 = vmatpush.msra.mxu0 0.0
        %975 = vmatpush.msra.mxu0 0.0
        %976 = vmatpush.msra.mxu0 0.0
        %977 = vmatpush.msra.mxu0 0.0
        %978 = vmatpush.msra.mxu0 0.0
        %979 = vmatpush.msra.mxu0 0.0
        %980 = vmatpush.msra.mxu0 0.0
        %981 = vmatpush.msra.mxu0 %v961
        %982 = vmatmul.f32.gmra.mxu0 %v958
        %v983 = vpop.f32.mrf.mxu0
        %v984 = vadd.f32 0.0, %v983
        %985 = vdwg.mxu0
        %986 = vmatpush.msra.mxu0 0.0
        %987 = vmatpush.msra.mxu0 0.0
        %988 = vmatpush.msra.mxu0 0.0
        %989 = vmatpush.msra.mxu0 0.0
        %990 = vmatpush.msra.mxu0 0.0
        %991 = vmatpush.msra.mxu0 0.0
        %992 = vmatpush.msra.mxu0 0.0
        %993 = vmatpush.msra.mxu0 0.0
        %994 = vmatpush.msra.mxu0 0.0
        %995 = vmatpush.msra.mxu0 0.0
        %996 = vmatpush.msra.mxu0 0.0
        %997 = vmatpush.msra.mxu0 0.0
        %998 = vmatpush.msra.mxu0 0.0
        %999 = vmatpush.msra.mxu0 0.0
        %1000 = vmatpush.msra.mxu0 0.0
        %1001 = vmatpush.msra.mxu0 %v964
        %1002 = vmatmul.f32.gmra.mxu0 %v958
        %v1003 = vpop.f32.mrf.mxu0
        %v1004 = vadd.f32 0.0, %v1003
        %1005 = vdwg.mxu0
        %v1006 = vadd.f32 %v947, %v984
        %v1007 = vadd.f32 %v948, %v1004
        %1008 = vrot.lane.b32.xlu0 %v536, 111
        %v1009 = vpop.permute.xlu0 %1008
        %1010 = vrot.lane.b32.xlu0 %v537, 111
        %v1011 = vpop.permute.xlu0 %1010
        %v1012 = vsel %vm450, %v1009, %v1011
        %v1013 = vsel %vm450, %v1011, %v1009
        %v1014 = vsel %vm455, %v1012, 0.0
        %v1015 = vsel %vm456, %v1013, 0.0
        %v1017 = vsel %vm563, %v546, 0
        %v1020 = vsel %vm331, %v1014, 0
        %v1023 = vsel %vm331, %v1015, 0
        %1025 = vmatpush.msra.mxu0 0.0
        %1026 = vmatpush.msra.mxu0 0.0
        %1027 = vmatpush.msra.mxu0 0.0
        %1028 = vmatpush.msra.mxu0 0.0
        %1029 = vmatpush.msra.mxu0 0.0
        %1030 = vmatpush.msra.mxu0 0.0
        %1031 = vmatpush.msra.mxu0 0.0
        %1032 = vmatpush.msra.mxu0 0.0
        %1033 = vmatpush.msra.mxu0 0.0
        %1034 = vmatpush.msra.mxu0 0.0
        %1035 = vmatpush.msra.mxu0 0.0
        %1036 = vmatpush.msra.mxu0 0.0
        %1037 = vmatpush.msra.mxu0 0.0
        %1038 = vmatpush.msra.mxu0 0.0
        %1039 = vmatpush.msra.mxu0 0.0
        %1040 = vmatpush.msra.mxu0 %v1020
        %1041 = vmatmul.f32.gmra.mxu0 %v1017
        %v1042 = vpop.f32.mrf.mxu0
        %v1043 = vadd.f32 0.0, %v1042
        %1044 = vdwg.mxu0
        %1045 = vmatpush.msra.mxu0 0.0
        %1046 = vmatpush.msra.mxu0 0.0
        %1047 = vmatpush.msra.mxu0 0.0
        %1048 = vmatpush.msra.mxu0 0.0
        %1049 = vmatpush.msra.mxu0 0.0
        %1050 = vmatpush.msra.mxu0 0.0
        %1051 = vmatpush.msra.mxu0 0.0
        %1052 = vmatpush.msra.mxu0 0.0
        %1053 = vmatpush.msra.mxu0 0.0
        %1054 = vmatpush.msra.mxu0 0.0
        %1055 = vmatpush.msra.mxu0 0.0
        %1056 = vmatpush.msra.mxu0 0.0
        %1057 = vmatpush.msra.mxu0 0.0
        %1058 = vmatpush.msra.mxu0 0.0
        %1059 = vmatpush.msra.mxu0 0.0
        %1060 = vmatpush.msra.mxu0 %v1023
        %1061 = vmatmul.f32.gmra.mxu0 %v1017
        %v1062 = vpop.f32.mrf.mxu0
        %v1063 = vadd.f32 0.0, %v1062
        %1064 = vdwg.mxu0
        %v1065 = vadd.f32 %v1006, %v1043
        %v1066 = vadd.f32 %v1007, %v1063
        %v1067 = vsel %vm331, %v1065, 0.0
        %v1068 = vsel %vm331, %v1066, 0.0
        %v1069 = vadd.f32 %v1067, %v1068
        %1070 = vadd.xlane.f32.xlu0 %v1069
        %v1071 = vpop.xlane.xlu0 %1070
        %v1072 = vmul.f32 %v1065, %v1065
        %v1073 = vmul.f32 %v1066, %v1066
        %v1074 = vsel %vm331, %v1072, 0.0
        %v1075 = vsel %vm331, %v1073, 0.0
        %v1076 = vadd.f32 %v1074, %v1075
        %1077 = vadd.xlane.f32.xlu0 %v1076
        %v1078 = vpop.xlane.xlu0 %1077
        %v1079 = vmul.f32 %v1071, 0.00390625
        %v1080 = vmul.f32 %v1078, 0.00390625
        %v1081 = vmul.f32 %v1079, %v1079
        %v1082 = vsub.f32 %v1080, %v1081
        %v1083 = vmax.f32 %v1082, 0.0
        %v1084 = vsub.f32 %v1065, %v1079
        %v1085 = vsub.f32 %v1066, %v1079
        %v1086 = vadd.f32 %v1083, 1e-05
        %v1087 = vrsqrt.pop %v1086
        %v1088 = vmul.f32 %v1087, %v1086
        %v1089 = vmul.f32 %v1088, %v1087
        %v1090 = vmul.f32 0.5, %v1089
        %v1091 = vsub.f32 1.5, %v1090
        %v1092 = vmul.f32 %v1087, %v1091
        %vm1093 = vweird.f32 %v1086
        %vm1094 = vweird.f32 %v1087
        %vm1095 = vmor %vm1093, %vm1094
        %v1096 = vsel %vm1095, %v1087, %v1092
        %v1097 = vmul.f32 %v1084, %v1096
        %v1098 = vmul.f32 %v1085, %v1096
        %v1099 = vmax.f32 %v1097, 0.0
        %v1100 = vmax.f32 %v1098, 0.0
        %v1103 = vrot.slane %v1100, 4
        %v1104 = vsel %vm331, %v1099, %v1103
        %1106 = vst [vmem:[%s247] sm:$0xff] %v1104
        %s1107 = sand.u32 %s143, 1
        %s1108 = scalar_lea.sflag [#allocation4], %s1107
        %s1109 = sand.u32 %s143, 1
        %s1110 = smul.addr %s1109, 8
        %s1111 = scalar_lea.vmem [#allocation5], %s1110
        // Predicated region
        $region45: #{tpu_custom_call.1} parent=39 // pred_check
          %p1112 = pneg %p153
        $region46: #{tpu_custom_call.1} parent=39 // pred_check_branch
          %1114 = sbr.rel (%p1112) target = $region48
        $region47: #{tpu_custom_call.1} parent=39 // pred_region
          %1116 = vsyncadd %s1108, 0
          %s1117 = smul.addr %s20, 2
          %s1118 = smul.addr %s1117, 4
          %s1119 = scalar_lea.hbm %s5, %s1118
          %s1121 = sshll.u32 %s1111, 4
          %s1122 = int_to_ptr.vmem [resolvable:$true] %s1121
          %s1123 = sshll.u32 %s1119, 4
          %s1124 = int_to_ptr.hbm [resolvable:$true] %s1123
          %1126 = dma.vmem_to_hbm [thread:$0]  %s1122, 128, %s1124, %s1108
        $region48: #{tpu_custom_call.1} parent=39 // pred_fallthru
          _
      $region40: #{tpu_custom_call.1} parent=5 // pred_fallthru
        _
      %p1127 = scmp.le.s32.totalorder 2, %s15
      // Predicated region
      $region49: #{tpu_custom_call.1} parent=5 // pred_check
        %p1128 = pneg %p1127
      $region50: #{tpu_custom_call.1} parent=5 // pred_check_branch
        %1130 = sbr.rel (%p1128) target = $region52
      $region51: #{tpu_custom_call.1} parent=5 // pred_region
        %s1131 = ssub.s32 %s15, 2
        // Predicated region
        $region53: #{tpu_custom_call.1} parent=51 // pred_check
          %p1132 = pneg %p159
        $region54: #{tpu_custom_call.1} parent=51 // pred_check_branch
          %1134 = sbr.rel (%p1132) target = $region56
        $region55: #{tpu_custom_call.1} parent=51 // pred_region
          %s1135 = sand.u32 %s144, 1
          %s1136 = scalar_lea.sflag [#allocation4], %s1135
          %s1137 = sand.u32 %s144, 1
          %s1138 = smul.addr %s1137, 8
          %s1139 = scalar_lea.vmem [#allocation5], %s1138
          %1141 = dma.done %s1136, 128
        $region56: #{tpu_custom_call.1} parent=51 // pred_fallthru
          _
      $region52: #{tpu_custom_call.1} parent=5 // pred_fallthru
        _
    $region6: #{tpu_custom_call.1} parent=1 // loop_footer
      %s19 = sadd.s32 1, %s15
    $region7: #{tpu_custom_call.1} parent=1 // loop_footer_branch
      %14 = sbr.rel target = $region3
    $region8: #{tpu_custom_call.1} parent=1 // loop_exit
      _
    %1142 = vsyncpa [#allocation3], 1
    %s1143 = scalar_lea.sflag [#allocation3], 1
    %1144 = vsyncpa %s1143, 1
    %1145 = vsyncpa [#allocation4], 1
    %s1146 = scalar_lea.sflag [#allocation4], 1
    %1147 = vsyncpa %s1146, 1

</llo_original>
